<compile_context>
chip_gen: v7x
topology: tpu7x:2x2x1
jax: 0.10.0
libtpu: 0.0.40
codegen_flags: <defaults>
</compile_context>

<pallas_src>
import jax
import jax.numpy as jnp
from jax import lax
from jax.experimental import pallas as pl
from jax.experimental.pallas import tpu as pltpu

LN_EPS = 1e-5


def _round_up(x, m):
    return ((x + m - 1) // m) * m


def _ln_mix(residual, gamma_ref, beta_ref, w_ref, b_ref, hs_out_ref, res_out_ref):
    """Shared tail: LayerNorm (fp32) -> Linear mixer (bf16 MXU, fp32 acc)."""
    mean = jnp.mean(residual, axis=-1, keepdims=True)
    xc = residual - mean
    var = jnp.mean(xc * xc, axis=-1, keepdims=True)
    inv = lax.rsqrt(var + LN_EPS)
    normed = xc * inv * gamma_ref[...] + beta_ref[...]            # (TN, D) fp32

    # Mixer: Linear(dim, dim). bf16 x bf16 -> fp32 accumulate on the MXU.
    mixed = jnp.dot(normed.astype(w_ref.dtype), w_ref[...],
                    preferred_element_type=jnp.float32) + b_ref[...]

    hs_out_ref[...] = mixed.astype(hs_out_ref.dtype)
    # residual_in_fp32=True: residual output stays fp32
    res_out_ref[...] = residual


def _block_kernel_res(hs_ref, res_ref, gamma_ref, beta_ref, w_ref, b_ref,
                      hs_out_ref, res_out_ref):
    # upcast in-kernel (free VPU op) instead of materializing fp32 copies in HBM
    residual = res_ref[...].astype(jnp.float32) + hs_ref[...].astype(jnp.float32)
    _ln_mix(residual, gamma_ref, beta_ref, w_ref, b_ref, hs_out_ref, res_out_ref)


def _block_kernel_nores(hs_ref, gamma_ref, beta_ref, w_ref, b_ref,
                        hs_out_ref, res_out_ref):
    # residual=None  =>  residual := hidden_states (no zero tensor materialized)
    residual = hs_ref[...].astype(jnp.float32)
    _ln_mix(residual, gamma_ref, beta_ref, w_ref, b_ref, hs_out_ref, res_out_ref)


def _vmem_capacity_bytes():
    try:
        return int(pltpu.get_tpu_info().vmem_capacity_bytes)
    except Exception:
        return 64 << 20   # conservative default (v7x per-TensorCore VMEM)


def block_forward(hidden_states, residual, gamma, beta, w_mix, b_mix):
    """hidden_states: (B, L, D); residual: (B, L, D) or None.

    Note: for best store efficiency D should be a multiple of 128 (real Vim dims are);
    smaller D (like the demo) is legal because the block covers the full lane extent.
    """
    B, L, D = hidden_states.shape
    N = B * L
    hs_bytes = jnp.dtype(hidden_states.dtype).itemsize
    has_res = residual is not None
    res_bytes = jnp.dtype(residual.dtype).itemsize if has_res else 0

    # sublane granularity: bf16 I/O packs 2 rows per sublane -> min (16,128) tile
    step = 16 if (hs_bytes < 4 or (has_res and res_bytes < 4)) else 8

    # ---- generation-aware tile / VMEM budget ----
    cap = _vmem_capacity_bytes()
    if cap >= (100 << 20):        # v5e / v6e: 128 MiB physical VMEM
        vmem_budget = 96 << 20
        tn_target = 2048
    else:                         # v7x: 64 MiB per TensorCore
        vmem_budget = 44 << 20
        tn_target = 1024

    def _footprint(t):
        io = t * D * hs_bytes                     # hs in
        if has_res:
            io += t * D * res_bytes               # res in (native dtype)
        io += t * D * hs_bytes                    # hs out (same dtype as input)
        io += t * D * 4                           # res out (fp32)
        interm = 4 * t * D * 4                    # live fp32/bf16 intermediates in body
        params = D * D * 2 + 3 * D * 4            # bf16 weight (single-buffered) + vecs
        return 2 * io + interm + params           # I/O blocks are double-buffered

    tn = max(step, min(_round_up(tn_target, step), _round_up(N, step)))
    while tn > step and _footprint(tn) > vmem_budget:
        tn = _round_up(max(tn // 2, step), step)
    # guarantee >=2 row tiles so the "parallel" axis spans both v7x TensorCores
    if -(-N // tn) < 2 and tn > step:
        tn = _round_up(max(-(-N // 2), step), step)

    grid = (pl.cdiv(N, tn),)      # ragged final block: reads padded, writes masked

    hs2d = hidden_states.reshape(N, D)            # native dtype, no HBM round-trip
    gamma2d = gamma.reshape(1, D).astype(jnp.float32)
    beta2d = beta.reshape(1, D).astype(jnp.float32)
    b2d = b_mix.reshape(1, D).astype(jnp.float32)
    w_bf16 = w_mix.astype(jnp.bfloat16)           # MXU fast path, half the VMEM

    out_shape = (
        jax.ShapeDtypeStruct((N, D), hidden_states.dtype),   # mixer output
        jax.ShapeDtypeStruct((N, D), jnp.float32),            # residual (fp32)
    )

    bytes_accessed = (N * D * hs_bytes                          # hs in
                      + (N * D * res_bytes if has_res else 0)   # res in
                      + D * D * 2 + 3 * D * 4                   # params
                      + N * D * hs_bytes                        # hs out
                      + N * D * 4)                              # res out
    cost = pl.CostEstimate(flops=2 * N * D * D,
                           transcendentals=N,
                           bytes_accessed=bytes_accessed)

    cparams = pltpu.CompilerParams(
        dimension_semantics=("parallel",),        # row tiles independent -> megacore
        vmem_limit_bytes=int(vmem_budget),
    )

    row_spec = pl.BlockSpec((tn, D), lambda i: (i, 0))

    def _run(single_buffer_invariants):
        kw = {"pipeline_mode": pl.Buffered(1)} if single_buffer_invariants else {}
        vec_spec = pl.BlockSpec((1, D), lambda i: (0, 0), **kw)
        w_spec = pl.BlockSpec((D, D), lambda i: (0, 0), **kw)
        if has_res:
            res2d = residual.reshape(N, D)        # native dtype; upcast in-kernel
            return pl.pallas_call(
                _block_kernel_res,
                out_shape=out_shape,
                grid=grid,
                in_specs=[row_spec, row_spec, vec_spec, vec_spec, w_spec, vec_spec],
                out_specs=(row_spec, row_spec),
                compiler_params=cparams,
                cost_estimate=cost,
            )(hs2d, res2d, gamma2d, beta2d, w_bf16, b2d)
        return pl.pallas_call(
            _block_kernel_nores,
            out_shape=out_shape,
            grid=grid,
            in_specs=[row_spec, vec_spec, vec_spec, w_spec, vec_spec],
            out_specs=(row_spec, row_spec),
            compiler_params=cparams,
            cost_estimate=cost,
        )(hs2d, gamma2d, beta2d, w_bf16, b2d)

    try:
        hs_out, res_out = _run(True)
    except Exception:
        # Fallback if pipeline_mode=pl.Buffered(1) is unsupported by this jax build;
        # identical semantics, just double-buffers the grid-invariant params.
        hs_out, res_out = _run(False)

    return hs_out.reshape(B, L, D), res_out.reshape(B, L, D)


def _ref_forward(hidden_states, residual, gamma, beta, w_mix, b_mix,
                 *, bf16_matmul=True):
    """Pure-JAX reference of the same Block semantics."""
    hs = hidden_states.astype(jnp.float32)
    res = hs if residual is None else residual.astype(jnp.float32) + hs
    mean = jnp.mean(res, axis=-1, keepdims=True)
    var = jnp.mean((res - mean) ** 2, axis=-1, keepdims=True)
    normed = (res - mean) * lax.rsqrt(var + LN_EPS) * gamma + beta
    if bf16_matmul:
        mixed = jnp.dot(normed.astype(jnp.bfloat16), w_mix.astype(jnp.bfloat16),
                        preferred_element_type=jnp.float32) + b_mix
    else:
        mixed = normed @ w_mix.astype(jnp.float32) + b_mix
    return mixed.astype(hidden_states.dtype), res


if __name__ == "__main__":
    # small demo shape; L=9 -> N=18 is NOT a multiple of the row tile, which
    # exercises the masked ragged final block (no wrapper-side padding/slicing).
    B, L, D = 2, 9, 32   # real model uses D multiple of 128

    key = jax.random.PRNGKey(0)
    k_hs, k_res, k_w = jax.random.split(key, 3)

    hidden_states = jax.random.normal(k_hs, (B, L, D), jnp.float32)
    residual_in = jax.random.normal(k_res, (B, L, D), jnp.float32)

    # deterministic parameters (LayerNorm: weight=1, bias=0; mixer Linear)
    gamma = jnp.ones((D,), jnp.float32)
    beta = jnp.zeros((D,), jnp.float32)
    w_mix = jax.random.normal(k_w, (D, D), jnp.float32) * (1.0 / jnp.sqrt(D))
    b_mix = jnp.zeros((D,), jnp.float32)

    # 1) residual provided (fp32 activations)
    hs_out, res_out = block_forward(hidden_states, residual_in,
                                    gamma, beta, w_mix, b_mix)
    # 2) first-block case: residual=None (dedicated kernel, no zero tensor)
    hs_out0, res_out0 = block_forward(hidden_states, None,
                                      gamma, beta, w_mix, b_mix)
    # 3) bf16 activations: no wrapper-side fp32 pre-cast, 16-row sublane rounding
    hs_bf = hidden_states.astype(jnp.bfloat16)
    res_bf = residual_in.astype(jnp.bfloat16)
    hs_out_bf, res_out_bf = block_forward(hs_bf, res_bf,
                                          gamma, beta, w_mix, b_mix)

    jax.block_until_ready((hs_out, res_out, hs_out0, res_out0,
                           hs_out_bf, res_out_bf))

    # sanity checks against pure-JAX references
    ref_hs, ref_res = _ref_forward(hidden_states, residual_in,
                                   gamma, beta, w_mix, b_mix)
    ref_hs0, ref_res0 = _ref_forward(hidden_states, None,
                                     gamma, beta, w_mix, b_mix)
    ref_hs_bf, ref_res_bf = _ref_forward(hs_bf, res_bf,
                                         gamma, beta, w_mix, b_mix)
    ref_hs_f32, _ = _ref_forward(hidden_states, residual_in,
                                 gamma, beta, w_mix, b_mix, bf16_matmul=False)

    # bf16-matched reference: tight-ish tolerance
    assert jnp.allclose(hs_out, ref_hs, atol=1e-2, rtol=1e-2)
    assert jnp.allclose(hs_out0, ref_hs0, atol=1e-2, rtol=1e-2)
    # fp32 reference: loose tolerance (bf16 MXU operands)
    assert jnp.allclose(hs_out, ref_hs_f32, atol=5e-2, rtol=5e-2)
    # residual path is pure fp32 -> exact-ish
    assert jnp.allclose(res_out, ref_res, atol=1e-5, rtol=1e-5)
    assert jnp.allclose(res_out0, ref_res0, atol=1e-5, rtol=1e-5)
    # bf16 activation path
    assert jnp.allclose(hs_out_bf.astype(jnp.float32),
                        ref_hs_bf.astype(jnp.float32), atol=3e-2, rtol=3e-2)
    assert jnp.allclose(res_out_bf, ref_res_bf, atol=1e-5, rtol=1e-5)

    print("KERNEL_OK")
</pallas_src>

<mosaic_0001>
module attributes {stable_mosaic.version = 11 : i64} {
  func.func @_block_kernel_res(%arg0: i32, %arg1: memref<16x32xf32, #tpu.memory_space<vmem>>, %arg2: memref<16x32xf32, #tpu.memory_space<vmem>>, %arg3: memref<1x32xf32, #tpu.memory_space<vmem>>, %arg4: memref<1x32xf32, #tpu.memory_space<vmem>>, %arg5: memref<32x32xbf16, #tpu.memory_space<vmem>>, %arg6: memref<1x32xf32, #tpu.memory_space<vmem>>, %arg7: memref<16x32xf32, #tpu.memory_space<vmem>>, %arg8: memref<16x32xf32, #tpu.memory_space<vmem>>) attributes {dimension_semantics = [#tpu.dimension_semantics<parallel>], iteration_bounds = array<i64: 2>, scalar_prefetch = 0 : i64, scratch_operands = 0 : i64, tpu.core_type = #tpu.core_type<tc>, window_params = [{transform_indices = @transform_0, window_bounds = array<i64: 16, 32>}, {transform_indices = @transform_1, window_bounds = array<i64: 16, 32>}, {pipeline_mode = #tpu.pipeline_mode<synchronous>, transform_indices = @transform_2, window_bounds = array<i64: 1, 32>}, {pipeline_mode = #tpu.pipeline_mode<synchronous>, transform_indices = @transform_3, window_bounds = array<i64: 1, 32>}, {pipeline_mode = #tpu.pipeline_mode<synchronous>, transform_indices = @transform_4, window_bounds = array<i64: 32, 32>}, {pipeline_mode = #tpu.pipeline_mode<synchronous>, transform_indices = @transform_5, window_bounds = array<i64: 1, 32>}, {transform_indices = @transform_6, window_bounds = array<i64: 16, 32>}, {transform_indices = @transform_7, window_bounds = array<i64: 16, 32>}]} {
    %c0 = arith.constant 0 : index
    %c0_0 = arith.constant 0 : index
    %0 = vector.load %arg2[%c0, %c0_0] : memref<16x32xf32, #tpu.memory_space<vmem>>, vector<16x32xf32>
    %c0_1 = arith.constant 0 : index
    %c0_2 = arith.constant 0 : index
    %1 = vector.load %arg1[%c0_1, %c0_2] : memref<16x32xf32, #tpu.memory_space<vmem>>, vector<16x32xf32>
    %2 = arith.addf %0, %1 : vector<16x32xf32>
    %cst = arith.constant dense<0.000000e+00> : vector<16xf32>
    %3 = vector.multi_reduction <add>, %2, %cst [1] : vector<16x32xf32> to vector<16xf32>
    %4 = vector.shape_cast %3 : vector<16xf32> to vector<16x1xf32>
    %cst_3 = arith.constant 3.200000e+01 : f32
    %5 = vector.broadcast %cst_3 : f32 to vector<16x1xf32>
    %6 = arith.divf %4, %5 : vector<16x1xf32>
    %7 = vector.broadcast %6 : vector<16x1xf32> to vector<16x32xf32>
    %8 = arith.subf %2, %7 : vector<16x32xf32>
    %9 = arith.mulf %8, %8 : vector<16x32xf32>
    %cst_4 = arith.constant dense<0.000000e+00> : vector<16xf32>
    %10 = vector.multi_reduction <add>, %9, %cst_4 [1] : vector<16x32xf32> to vector<16xf32>
    %11 = vector.shape_cast %10 : vector<16xf32> to vector<16x1xf32>
    %cst_5 = arith.constant 3.200000e+01 : f32
    %12 = vector.broadcast %cst_5 : f32 to vector<16x1xf32>
    %13 = arith.divf %11, %12 : vector<16x1xf32>
    %cst_6 = arith.constant 9.99999974E-6 : f32
    %14 = vector.broadcast %cst_6 : f32 to vector<16x1xf32>
    %15 = arith.addf %13, %14 : vector<16x1xf32>
    %16 = math.rsqrt %15 : vector<16x1xf32>
    %17 = vector.broadcast %16 : vector<16x1xf32> to vector<16x32xf32>
    %18 = arith.mulf %8, %17 : vector<16x32xf32>
    %c0_7 = arith.constant 0 : index
    %c0_8 = arith.constant 0 : index
    %19 = vector.load %arg3[%c0_7, %c0_8] : memref<1x32xf32, #tpu.memory_space<vmem>>, vector<1x32xf32>
    %20 = vector.broadcast %19 : vector<1x32xf32> to vector<16x32xf32>
    %21 = arith.mulf %18, %20 : vector<16x32xf32>
    %c0_9 = arith.constant 0 : index
    %c0_10 = arith.constant 0 : index
    %22 = vector.load %arg4[%c0_9, %c0_10] : memref<1x32xf32, #tpu.memory_space<vmem>>, vector<1x32xf32>
    %23 = vector.broadcast %22 : vector<1x32xf32> to vector<16x32xf32>
    %24 = arith.addf %21, %23 : vector<16x32xf32>
    %25 = arith.truncf %24 : vector<16x32xf32> to vector<16x32xbf16>
    %c0_11 = arith.constant 0 : index
    %c0_12 = arith.constant 0 : index
    %26 = vector.load %arg5[%c0_11, %c0_12] : memref<32x32xbf16, #tpu.memory_space<vmem>>, vector<32x32xbf16>
    %cst_13 = arith.constant dense<0.000000e+00> : vector<16x32xf32>
    %27 = tpu.matmul %25, %26, %cst_13 {dimension_numbers = #tpu.dot_dimension_numbers<[1], [0], [0], [1], [0, 0, 1, 1], [], []>} : vector<16x32xbf16>, vector<32x32xbf16>, vector<16x32xf32> -> vector<16x32xf32>
    %c0_14 = arith.constant 0 : index
    %c0_15 = arith.constant 0 : index
    %28 = vector.load %arg6[%c0_14, %c0_15] : memref<1x32xf32, #tpu.memory_space<vmem>>, vector<1x32xf32>
    %29 = vector.broadcast %28 : vector<1x32xf32> to vector<16x32xf32>
    %30 = arith.addf %27, %29 : vector<16x32xf32>
    %c0_16 = arith.constant 0 : index
    %c0_17 = arith.constant 0 : index
    %31 = vector.load %arg7[%c0_16, %c0_17] : memref<16x32xf32, #tpu.memory_space<vmem>>, vector<16x32xf32>
    tpu.vector_store %arg7[%c0_16, %c0_17], %30 {strides = array<i32>} : memref<16x32xf32, #tpu.memory_space<vmem>>, vector<16x32xf32>,
    %c0_18 = arith.constant 0 : index
    %c0_19 = arith.constant 0 : index
    %32 = vector.load %arg8[%c0_18, %c0_19] : memref<16x32xf32, #tpu.memory_space<vmem>>, vector<16x32xf32>
    tpu.vector_store %arg8[%c0_18, %c0_19], %2 {strides = array<i32>} : memref<16x32xf32, #tpu.memory_space<vmem>>, vector<16x32xf32>,
    return
  }
  func.func @transform_0(%arg0: i32) -> (i32, i32) {
    %c0_i32 = arith.constant 0 : i32
    %c0_i32_0 = arith.constant 0 : i32
    return %arg0, %c0_i32 : i32, i32
  }
  func.func @transform_1(%arg0: i32) -> (i32, i32) {
    %c0_i32 = arith.constant 0 : i32
    %c0_i32_0 = arith.constant 0 : i32
    return %arg0, %c0_i32 : i32, i32
  }
  func.func @transform_2(%arg0: i32) -> (i32, i32) {
    %c0_i32 = arith.constant 0 : i32
    %c0_i32_0 = arith.constant 0 : i32
    %c0_i32_1 = arith.constant 0 : i32
    return %c0_i32, %c0_i32_0 : i32, i32
  }
  func.func @transform_3(%arg0: i32) -> (i32, i32) {
    %c0_i32 = arith.constant 0 : i32
    %c0_i32_0 = arith.constant 0 : i32
    %c0_i32_1 = arith.constant 0 : i32
    return %c0_i32, %c0_i32_0 : i32, i32
  }
  func.func @transform_4(%arg0: i32) -> (i32, i32) {
    %c0_i32 = arith.constant 0 : i32
    %c0_i32_0 = arith.constant 0 : i32
    %c0_i32_1 = arith.constant 0 : i32
    return %c0_i32, %c0_i32_0 : i32, i32
  }
  func.func @transform_5(%arg0: i32) -> (i32, i32) {
    %c0_i32 = arith.constant 0 : i32
    %c0_i32_0 = arith.constant 0 : i32
    %c0_i32_1 = arith.constant 0 : i32
    return %c0_i32, %c0_i32_0 : i32, i32
  }
  func.func @transform_6(%arg0: i32) -> (i32, i32) {
    %c0_i32 = arith.constant 0 : i32
    %c0_i32_0 = arith.constant 0 : i32
    return %arg0, %c0_i32 : i32, i32
  }
  func.func @transform_7(%arg0: i32) -> (i32, i32) {
    %c0_i32 = arith.constant 0 : i32
    %c0_i32_0 = arith.constant 0 : i32
    return %arg0, %c0_i32 : i32, i32
  }
}

module attributes {stable_mosaic.version = 11 : i64} {
  func.func @_block_kernel_res(%arg0: i32, %arg1: memref<16x32xf32, #tpu.memory_space<vmem>>, %arg2: memref<16x32xf32, #tpu.memory_space<vmem>>, %arg3: memref<1x32xf32, #tpu.memory_space<vmem>>, %arg4: memref<1x32xf32, #tpu.memory_space<vmem>>, %arg5: memref<32x32xbf16, #tpu.memory_space<vmem>>, %arg6: memref<1x32xf32, #tpu.memory_space<vmem>>, %arg7: memref<16x32xf32, #tpu.memory_space<vmem>>, %arg8: memref<16x32xf32, #tpu.memory_space<vmem>>) attributes {dimension_semantics = [#tpu.dimension_semantics<parallel>], iteration_bounds = array<i64: 2>, scalar_prefetch = 0 : i64, scratch_operands = 0 : i64, tpu.core_type = #tpu.core_type<tc>, window_params = [{transform_indices = @transform_0, window_bounds = array<i64: 16, 32>}, {transform_indices = @transform_1, window_bounds = array<i64: 16, 32>}, {pipeline_mode = #tpu.pipeline_mode<synchronous>, transform_indices = @transform_2, window_bounds = array<i64: 1, 32>}, {pipeline_mode = #tpu.pipeline_mode<synchronous>, transform_indices = @transform_3, window_bounds = array<i64: 1, 32>}, {pipeline_mode = #tpu.pipeline_mode<synchronous>, transform_indices = @transform_4, window_bounds = array<i64: 32, 32>}, {pipeline_mode = #tpu.pipeline_mode<synchronous>, transform_indices = @transform_5, window_bounds = array<i64: 1, 32>}, {transform_indices = @transform_6, window_bounds = array<i64: 16, 32>}, {transform_indices = @transform_7, window_bounds = array<i64: 16, 32>}]} {
    %c0 = arith.constant 0 : index
    %c0_0 = arith.constant 0 : index
    %0 = vector.load %arg2[%c0, %c0_0] : memref<16x32xf32, #tpu.memory_space<vmem>>, vector<16x32xf32>
    %c0_1 = arith.constant 0 : index
    %c0_2 = arith.constant 0 : index
    %1 = vector.load %arg1[%c0_1, %c0_2] : memref<16x32xf32, #tpu.memory_space<vmem>>, vector<16x32xf32>
    %2 = arith.addf %0, %1 : vector<16x32xf32>
    %cst = arith.constant dense<0.000000e+00> : vector<16xf32>
    %3 = vector.multi_reduction <add>, %2, %cst [1] : vector<16x32xf32> to vector<16xf32>
    %4 = vector.shape_cast %3 : vector<16xf32> to vector<16x1xf32>
    %cst_3 = arith.constant 3.200000e+01 : f32
    %5 = vector.broadcast %cst_3 : f32 to vector<16x1xf32>
    %6 = arith.divf %4, %5 : vector<16x1xf32>
    %7 = vector.broadcast %6 : vector<16x1xf32> to vector<16x32xf32>
    %8 = arith.subf %2, %7 : vector<16x32xf32>
    %9 = arith.mulf %8, %8 : vector<16x32xf32>
    %cst_4 = arith.constant dense<0.000000e+00> : vector<16xf32>
    %10 = vector.multi_reduction <add>, %9, %cst_4 [1] : vector<16x32xf32> to vector<16xf32>
    %11 = vector.shape_cast %10 : vector<16xf32> to vector<16x1xf32>
    %cst_5 = arith.constant 3.200000e+01 : f32
    %12 = vector.broadcast %cst_5 : f32 to vector<16x1xf32>
    %13 = arith.divf %11, %12 : vector<16x1xf32>
    %cst_6 = arith.constant 9.99999974E-6 : f32
    %14 = vector.broadcast %cst_6 : f32 to vector<16x1xf32>
    %15 = arith.addf %13, %14 : vector<16x1xf32>
    %16 = math.rsqrt %15 : vector<16x1xf32>
    %17 = vector.broadcast %16 : vector<16x1xf32> to vector<16x32xf32>
    %18 = arith.mulf %8, %17 : vector<16x32xf32>
    %c0_7 = arith.constant 0 : index
    %c0_8 = arith.constant 0 : index
    %19 = vector.load %arg3[%c0_7, %c0_8] : memref<1x32xf32, #tpu.memory_space<vmem>>, vector<1x32xf32>
    %20 = vector.broadcast %19 : vector<1x32xf32> to vector<16x32xf32>
    %21 = arith.mulf %18, %20 : vector<16x32xf32>
    %c0_9 = arith.constant 0 : index
    %c0_10 = arith.constant 0 : index
    %22 = vector.load %arg4[%c0_9, %c0_10] : memref<1x32xf32, #tpu.memory_space<vmem>>, vector<1x32xf32>
    %23 = vector.broadcast %22 : vector<1x32xf32> to vector<16x32xf32>
    %24 = arith.addf %21, %23 : vector<16x32xf32>
    %25 = arith.truncf %24 : vector<16x32xf32> to vector<16x32xbf16>
    %c0_11 = arith.constant 0 : index
    %c0_12 = arith.constant 0 : index
    %26 = vector.load %arg5[%c0_11, %c0_12] : memref<32x32xbf16, #tpu.memory_space<vmem>>, vector<32x32xbf16>
    %cst_13 = arith.constant dense<0.000000e+00> : vector<16x32xf32>
    %27 = tpu.matmul %25, %26, %cst_13 {dimension_numbers = #tpu.dot_dimension_numbers<[1], [0], [0], [1], [0, 0, 1, 1], [], []>} : vector<16x32xbf16>, vector<32x32xbf16>, vector<16x32xf32> -> vector<16x32xf32>
    %c0_14 = arith.constant 0 : index
    %c0_15 = arith.constant 0 : index
    %28 = vector.load %arg6[%c0_14, %c0_15] : memref<1x32xf32, #tpu.memory_space<vmem>>, vector<1x32xf32>
    %29 = vector.broadcast %28 : vector<1x32xf32> to vector<16x32xf32>
    %30 = arith.addf %27, %29 : vector<16x32xf32>
    %c0_16 = arith.constant 0 : index
    %c0_17 = arith.constant 0 : index
    %31 = vector.load %arg7[%c0_16, %c0_17] : memref<16x32xf32, #tpu.memory_space<vmem>>, vector<16x32xf32>
    tpu.vector_store %arg7[%c0_16, %c0_17], %30 {strides = array<i32>} : memref<16x32xf32, #tpu.memory_space<vmem>>, vector<16x32xf32>,
    %c0_18 = arith.constant 0 : index
    %c0_19 = arith.constant 0 : index
    %32 = vector.load %arg8[%c0_18, %c0_19] : memref<16x32xf32, #tpu.memory_space<vmem>>, vector<16x32xf32>
    tpu.vector_store %arg8[%c0_18, %c0_19], %2 {strides = array<i32>} : memref<16x32xf32, #tpu.memory_space<vmem>>, vector<16x32xf32>,
    return
  }
  func.func @transform_0(%arg0: i32) -> (i32, i32) {
    %c0_i32 = arith.constant 0 : i32
    %c0_i32_0 = arith.constant 0 : i32
    return %arg0, %c0_i32 : i32, i32
  }
  func.func @transform_1(%arg0: i32) -> (i32, i32) {
    %c0_i32 = arith.constant 0 : i32
    %c0_i32_0 = arith.constant 0 : i32
    return %arg0, %c0_i32 : i32, i32
  }
  func.func @transform_2(%arg0: i32) -> (i32, i32) {
    %c0_i32 = arith.constant 0 : i32
    %c0_i32_0 = arith.constant 0 : i32
    %c0_i32_1 = arith.constant 0 : i32
    return %c0_i32, %c0_i32_0 : i32, i32
  }
  func.func @transform_3(%arg0: i32) -> (i32, i32) {
    %c0_i32 = arith.constant 0 : i32
    %c0_i32_0 = arith.constant 0 : i32
    %c0_i32_1 = arith.constant 0 : i32
    return %c0_i32, %c0_i32_0 : i32, i32
  }
  func.func @transform_4(%arg0: i32) -> (i32, i32) {
    %c0_i32 = arith.constant 0 : i32
    %c0_i32_0 = arith.constant 0 : i32
    %c0_i32_1 = arith.constant 0 : i32
    return %c0_i32, %c0_i32_0 : i32, i32
  }
  func.func @transform_5(%arg0: i32) -> (i32, i32) {
    %c0_i32 = arith.constant 0 : i32
    %c0_i32_0 = arith.constant 0 : i32
    %c0_i32_1 = arith.constant 0 : i32
    return %c0_i32, %c0_i32_0 : i32, i32
  }
  func.func @transform_6(%arg0: i32) -> (i32, i32) {
    %c0_i32 = arith.constant 0 : i32
    %c0_i32_0 = arith.constant 0 : i32
    return %arg0, %c0_i32 : i32, i32
  }
  func.func @transform_7(%arg0: i32) -> (i32, i32) {
    %c0_i32 = arith.constant 0 : i32
    %c0_i32_0 = arith.constant 0 : i32
    return %arg0, %c0_i32 : i32, i32
  }
}

</mosaic_0001>

<llo_original>
// kernel: tpu_custom_call.1
$region0: #{tpu_custom_call.1}
  #allocation0 [shape = 'u32[]', space=smem, size = 0x4, offset = 0x4, fixed_abs, tag = 'smem constant byte address 0x4 - core index']
  #allocation1 [shape = 'u32[144,128]{1,0:T(1,128)}', space=vmem, size = 0x12000, scoped, tag = 'internal scratch']
  %s0 = inlined_call_operand.hbm [shape: f32[18,32], index: 0, kind: input, shape index: {}]
  %s1 = inlined_call_operand.hbm [shape: f32[18,32], index: 1, kind: input, shape index: {}]
  %s2 = inlined_call_operand.vmem [shape: f32[1,32], index: 2, kind: input, shape index: {}]
  %s3 = inlined_call_operand.vmem [shape: f32[1,32], index: 3, kind: input, shape index: {}]
  %s4 = inlined_call_operand.hbm [shape: bf16[32,32], index: 4, kind: input, shape index: {}]
  %s5 = inlined_call_operand.vmem [shape: f32[1,32], index: 5, kind: input, shape index: {}]
  %s6 = inlined_call_operand.hbm [shape: f32[18,32], index: 6, kind: output, shape index: {0}]
  %s7 = inlined_call_operand.hbm [shape: f32[18,32], index: 7, kind: output, shape index: {1}]
  %8 = xla_tuple %s6, %s7
  %s9 = sld [smem:[#allocation0]]
  $region77: #{tpu_custom_call.1} parent=0
    _
  %s11 = ssub.s32 1, %s9
  %s12 = scalar_select 0, %s11, %s9
  $region1: #{tpu_custom_call.1} parent=0
    #allocation2 [shape = 'u8[16384]{0}', space=vmem, size = 0x4000, scoped, tag = 'input window, operand 0']
    #allocation3 [shape = 's32[2]{0}', space=sflag, size = 0x8, scoped, tag = 'scoped memory for tpu_custom_call.1']
    #allocation4 [shape = 's32[2]{0}', space=sflag, size = 0x8, scoped, tag = 'scoped memory for tpu_custom_call.1']
    #allocation5 [shape = 'u8[16384]{0}', space=vmem, size = 0x4000, scoped, tag = 'input window, operand 1']
    #allocation6 [shape = 's32[2]{0}', space=sflag, size = 0x8, scoped, tag = 'scoped memory for tpu_custom_call.1']
    #allocation7 [shape = 'u8[8192]{0}', space=vmem, size = 0x2000, scoped, tag = 'input window, operand 4, single buffered']
    #allocation8 [shape = 'u8[16384]{0}', space=vmem, size = 0x4000, scoped, tag = 'output window, operand 0']
    #allocation9 [shape = 'u8[16384]{0}', space=vmem, size = 0x4000, scoped, tag = 'output window, operand 1']
    #allocation10 [shape = 's32[2]{0}', space=sflag, size = 0x8, scoped, tag = 'scoped memory for tpu_custom_call.1']
    %13 = vsyncpa [#allocation3], 0
    %s14 = scalar_lea.sflag [#allocation3], 1
    %15 = vsyncpa %s14, 0
    %16 = vsyncpa [#allocation6], 0
    %s17 = scalar_lea.sflag [#allocation6], 1
    %18 = vsyncpa %s17, 0
    %19 = vsyncpa [#allocation4], 0
    %s20 = scalar_lea.sflag [#allocation4], 1
    %21 = vsyncpa %s20, 0
    %22 = vsyncpa [#allocation10], 0
    %s23 = scalar_lea.sflag [#allocation10], 1
    %24 = vsyncpa %s23, 0
    loop: start=0, step=1, limit=4
    $region2: #{tpu_custom_call.1} parent=1 // loop_pre_header
      _
    $region3: #{tpu_custom_call.1} parent=1 // loop_header
      %s26 = sphi 0, %s30
      %p27 = scmp.ge.s32.totalorder %s26, 4
      %s36 = sphi 0, %s38
      %s39 = sphi 0, %s36
      %s40 = sphi 0, %s39
      %s56 = sphi 0, %s40
      %s62 = sphi 0, %s64
      %s65 = sphi 0, %s62
      %s66 = sphi 0, %s65
      %s82 = sphi 0, %s66
      %s86 = sphi 0, %s86
      %s88 = sphi 0, %s86
      %s89 = sphi 0, %s88
      %s103 = sphi 0, %s89
      %s107 = sphi 0, %s107
      %s109 = sphi 0, %s107
      %s110 = sphi 0, %s109
      %s124 = sphi 0, %s110
      %s128 = sphi 0, %s128
      %s130 = sphi 0, %s128
      %s131 = sphi 0, %s130
      %s145 = sphi 0, %s131
      %s149 = sphi 0, %s149
      %s151 = sphi 0, %s149
      %s152 = sphi 0, %s151
      %s166 = sphi 0, %s152
      %s172 = sphi 0, %s174
      %s175 = sphi 0, %s172
      %s176 = sphi 0, %s175
      %s192 = sphi 0, %s176
      %s198 = sphi 0, %s200
      %s201 = sphi 0, %s198
      %s202 = sphi 0, %s201
      %s218 = sphi 0, %s202
    $region4: #{tpu_custom_call.1} parent=1 // loop_header_branch
      %29 = sbr.rel (%p27) target = $region8
    $region5: #{tpu_custom_call.1} parent=1 // loop_body
      %s31 = ssub.s32 %s26, 1
      %s32 = ssub.s32 %s26, 2
      %s33 = sadd.s32 %s26, 1
      %s34 = ssub.s32 %s26, %s33
      %p35 = scmp.eq.s32.totalorder %s34, 0
      %s37 = sadd.s32 %s36, 1
      %s38 = scalar_select %p35, %s36, %s37
      %p41 = pneg %p35
      %p42 = scmp.eq.s32.totalorder %s26, 1
      %p43 = por %p41, %p42
      %p44 = scmp.ne.s32.totalorder %s36, %s39
      %p45 = scmp.eq.s32.totalorder %s26, 0
      %p46 = por %p44, %p45
      %p47 = scmp.ne.s32.totalorder %s36, %s39
      %p48 = scmp.eq.s32.totalorder %s31, 1
      %p49 = por %p47, %p48
      %p50 = scmp.ne.s32.totalorder %s39, %s40
      %p51 = scmp.eq.s32.totalorder %s31, 0
      %p52 = por %p50, %p51
      %p53 = scmp.ne.s32.totalorder %s39, %s40
      %p54 = scmp.eq.s32.totalorder %s32, 1
      %p55 = por %p53, %p54
      %p57 = scmp.ne.s32.totalorder %s40, %s56
      %p58 = scmp.eq.s32.totalorder %s32, 0
      %p59 = por %p57, %p58
      %s60 = ssub.s32 %s26, %s33
      %p61 = scmp.eq.s32.totalorder %s60, 0
      %s63 = sadd.s32 %s62, 1
      %s64 = scalar_select %p61, %s62, %s63
      %p67 = pneg %p61
      %p68 = scmp.eq.s32.totalorder %s26, 1
      %p69 = por %p67, %p68
      %p70 = scmp.ne.s32.totalorder %s62, %s65
      %p71 = scmp.eq.s32.totalorder %s26, 0
      %p72 = por %p70, %p71
      %p73 = scmp.ne.s32.totalorder %s62, %s65
      %p74 = scmp.eq.s32.totalorder %s31, 1
      %p75 = por %p73, %p74
      %p76 = scmp.ne.s32.totalorder %s65, %s66
      %p77 = scmp.eq.s32.totalorder %s31, 0
      %p78 = por %p76, %p77
      %p79 = scmp.ne.s32.totalorder %s65, %s66
      %p80 = scmp.eq.s32.totalorder %s32, 1
      %p81 = por %p79, %p80
      %p83 = scmp.ne.s32.totalorder %s66, %s82
      %p84 = scmp.eq.s32.totalorder %s32, 0
      %p85 = por %p83, %p84
      %s87 = sadd.s32 %s86, 1
      %p90 = scmp.eq.s32.totalorder %s26, 1
      %p91 = scmp.ne.s32.totalorder %s86, %s88
      %p92 = scmp.eq.s32.totalorder %s26, 0
      %p93 = por %p91, %p92
      %p94 = scmp.ne.s32.totalorder %s86, %s88
      %p95 = scmp.eq.s32.totalorder %s31, 1
      %p96 = por %p94, %p95
      %p97 = scmp.ne.s32.totalorder %s88, %s89
      %p98 = scmp.eq.s32.totalorder %s31, 0
      %p99 = por %p97, %p98
      %p100 = scmp.ne.s32.totalorder %s88, %s89
      %p101 = scmp.eq.s32.totalorder %s32, 1
      %p102 = por %p100, %p101
      %p104 = scmp.ne.s32.totalorder %s89, %s103
      %p105 = scmp.eq.s32.totalorder %s32, 0
      %p106 = por %p104, %p105
      %s108 = sadd.s32 %s107, 1
      %p111 = scmp.eq.s32.totalorder %s26, 1
      %p112 = scmp.ne.s32.totalorder %s107, %s109
      %p113 = scmp.eq.s32.totalorder %s26, 0
      %p114 = por %p112, %p113
      %p115 = scmp.ne.s32.totalorder %s107, %s109
      %p116 = scmp.eq.s32.totalorder %s31, 1
      %p117 = por %p115, %p116
      %p118 = scmp.ne.s32.totalorder %s109, %s110
      %p119 = scmp.eq.s32.totalorder %s31, 0
      %p120 = por %p118, %p119
      %p121 = scmp.ne.s32.totalorder %s109, %s110
      %p122 = scmp.eq.s32.totalorder %s32, 1
      %p123 = por %p121, %p122
      %p125 = scmp.ne.s32.totalorder %s110, %s124
      %p126 = scmp.eq.s32.totalorder %s32, 0
      %p127 = por %p125, %p126
      %s129 = sadd.s32 %s128, 1
      %p132 = scmp.eq.s32.totalorder %s26, 1
      %p133 = scmp.ne.s32.totalorder %s128, %s130
      %p134 = scmp.eq.s32.totalorder %s26, 0
      %p135 = por %p133, %p134
      %p136 = scmp.ne.s32.totalorder %s128, %s130
      %p137 = scmp.eq.s32.totalorder %s31, 1
      %p138 = por %p136, %p137
      %p139 = scmp.ne.s32.totalorder %s130, %s131
      %p140 = scmp.eq.s32.totalorder %s31, 0
      %p141 = por %p139, %p140
      %p142 = scmp.ne.s32.totalorder %s130, %s131
      %p143 = scmp.eq.s32.totalorder %s32, 1
      %p144 = por %p142, %p143
      %p146 = scmp.ne.s32.totalorder %s131, %s145
      %p147 = scmp.eq.s32.totalorder %s32, 0
      %p148 = por %p146, %p147
      %s150 = sadd.s32 %s149, 1
      %p153 = scmp.eq.s32.totalorder %s26, 1
      %p154 = scmp.ne.s32.totalorder %s149, %s151
      %p155 = scmp.eq.s32.totalorder %s26, 0
      %p156 = por %p154, %p155
      %p157 = scmp.ne.s32.totalorder %s149, %s151
      %p158 = scmp.eq.s32.totalorder %s31, 1
      %p159 = por %p157, %p158
      %p160 = scmp.ne.s32.totalorder %s151, %s152
      %p161 = scmp.eq.s32.totalorder %s31, 0
      %p162 = por %p160, %p161
      %p163 = scmp.ne.s32.totalorder %s151, %s152
      %p164 = scmp.eq.s32.totalorder %s32, 1
      %p165 = por %p163, %p164
      %p167 = scmp.ne.s32.totalorder %s152, %s166
      %p168 = scmp.eq.s32.totalorder %s32, 0
      %p169 = por %p167, %p168
      %s170 = ssub.s32 %s26, %s33
      %p171 = scmp.eq.s32.totalorder %s170, 0
      %s173 = sadd.s32 %s172, 1
      %s174 = scalar_select %p171, %s172, %s173
      %p177 = pneg %p171
      %p178 = scmp.eq.s32.totalorder %s26, 1
      %p179 = por %p177, %p178
      %p180 = scmp.ne.s32.totalorder %s172, %s175
      %p181 = scmp.eq.s32.totalorder %s26, 0
      %p182 = por %p180, %p181
      %p183 = scmp.ne.s32.totalorder %s172, %s175
      %p184 = scmp.eq.s32.totalorder %s31, 1
      %p185 = por %p183, %p184
      %p186 = scmp.ne.s32.totalorder %s175, %s176
      %p187 = scmp.eq.s32.totalorder %s31, 0
      %p188 = por %p186, %p187
      %p189 = scmp.ne.s32.totalorder %s175, %s176
      %p190 = scmp.eq.s32.totalorder %s32, 1
      %p191 = por %p189, %p190
      %p193 = scmp.ne.s32.totalorder %s176, %s192
      %p194 = scmp.eq.s32.totalorder %s32, 0
      %p195 = por %p193, %p194
      %s196 = ssub.s32 %s26, %s33
      %p197 = scmp.eq.s32.totalorder %s196, 0
      %s199 = sadd.s32 %s198, 1
      %s200 = scalar_select %p197, %s198, %s199
      %p203 = pneg %p197
      %p204 = scmp.eq.s32.totalorder %s26, 1
      %p205 = por %p203, %p204
      %p206 = scmp.ne.s32.totalorder %s198, %s201
      %p207 = scmp.eq.s32.totalorder %s26, 0
      %p208 = por %p206, %p207
      %p209 = scmp.ne.s32.totalorder %s198, %s201
      %p210 = scmp.eq.s32.totalorder %s31, 1
      %p211 = por %p209, %p210
      %p212 = scmp.ne.s32.totalorder %s201, %s202
      %p213 = scmp.eq.s32.totalorder %s31, 0
      %p214 = por %p212, %p213
      %p215 = scmp.ne.s32.totalorder %s201, %s202
      %p216 = scmp.eq.s32.totalorder %s32, 1
      %p217 = por %p215, %p216
      %p219 = scmp.ne.s32.totalorder %s202, %s218
      %p220 = scmp.eq.s32.totalorder %s32, 0
      %p221 = por %p219, %p220
      %p222 = scmp.le.s32.totalorder 1, %s26
      %p223 = scmp.lt.s32.totalorder %s26, 3
      %p224 = pnand %p222, %p223
      %p225 = pneg %p224
      // Predicated region
      $region9: #{tpu_custom_call.1} parent=5 // pred_check
        _
      $region10: #{tpu_custom_call.1} parent=5 // pred_check_branch
        %227 = sbr.rel (%p224) target = $region12
      $region11: #{tpu_custom_call.1} parent=5 // pred_region
        %s228 = ssub.s32 %s26, 1
        // Predicated region
        $region13: #{tpu_custom_call.1} parent=11 // pred_check
          %p229 = pneg %p99
        $region14: #{tpu_custom_call.1} parent=11 // pred_check_branch
          %231 = sbr.rel (%p229) target = $region16
        $region15: #{tpu_custom_call.1} parent=11 // pred_region
          _
        $region16: #{tpu_custom_call.1} parent=11 // pred_fallthru
          _
        // Predicated region
        $region17: #{tpu_custom_call.1} parent=11 // pred_check
          %p232 = pneg %p120
        $region18: #{tpu_custom_call.1} parent=11 // pred_check_branch
          %234 = sbr.rel (%p232) target = $region20
        $region19: #{tpu_custom_call.1} parent=11 // pred_region
          _
        $region20: #{tpu_custom_call.1} parent=11 // pred_fallthru
          _
        // Predicated region
        $region21: #{tpu_custom_call.1} parent=11 // pred_check
          %p235 = pneg %p141
        $region22: #{tpu_custom_call.1} parent=11 // pred_check_branch
          %237 = sbr.rel (%p235) target = $region24
        $region23: #{tpu_custom_call.1} parent=11 // pred_region
          %s239 = ssub.s32 256, 256
          %240 = vsyncadd [#allocation6], %s239
          %s241 = sshll.u32 [#allocation7], 4
          %s242 = int_to_ptr.vmem [resolvable:$true] %s241
          %247 = dma.hbm_to_vmem [thread:$0]  %s4, 256, %s242, [#allocation6], 64, 64, 4
        $region24: #{tpu_custom_call.1} parent=11 // pred_fallthru
          _
        // Predicated region
        $region25: #{tpu_custom_call.1} parent=11 // pred_check
          %p248 = pneg %p162
        $region26: #{tpu_custom_call.1} parent=11 // pred_check_branch
          %250 = sbr.rel (%p248) target = $region28
        $region27: #{tpu_custom_call.1} parent=11 // pred_region
          _
        $region28: #{tpu_custom_call.1} parent=11 // pred_fallthru
          _
      $region12: #{tpu_custom_call.1} parent=5 // pred_fallthru
        _
      %p251 = scmp.lt.s32.totalorder %s26, 2
      // Predicated region
      $region29: #{tpu_custom_call.1} parent=5 // pred_check
        %p252 = pneg %p251
      $region30: #{tpu_custom_call.1} parent=5 // pred_check_branch
        %254 = sbr.rel (%p252) target = $region32
      $region31: #{tpu_custom_call.1} parent=5 // pred_region
        // Predicated region
        $region33: #{tpu_custom_call.1} parent=31 // pred_check
          %p255 = pneg %p46
        $region34: #{tpu_custom_call.1} parent=31 // pred_check_branch
          %257 = sbr.rel (%p255) target = $region36
        $region35: #{tpu_custom_call.1} parent=31 // pred_region
          %s258 = sand.u32 %s36, 1
          %s259 = scalar_lea.sflag [#allocation3], %s258
          %s260 = sand.u32 %s36, 1
          %s261 = smul.addr %s260, 16
          %s262 = scalar_lea.vmem [#allocation2], %s261
          %s263 = smul.u32 2, %s26
          %s264 = ssub.s32 3, %s263
          %p265 = scmp.lt.s32.totalorder %s264, 2
          %s266 = scalar_select %p265, %s264, 2
          %s267 = smul.u32 128, %s266
          %s269 = ssub.s32 256, %s267
          %270 = vsyncadd %s259, %s269
          %p271 = scmp.ne.s32.totalorder 0, %s267
          %s272 = smul.addr %s263, 128
          %s273 = scalar_lea.hbm %s0, %s272
          %s274 = smul.u32 8, %s266
          %s275 = sshll.u32 %s262, 4
          %s276 = int_to_ptr.vmem [resolvable:$true] %s275
          %s277 = sshll.u32 %s274, 4
          %281 = dma.hbm_to_vmem [thread:$0]  (%p271), %s273, %s277, %s276, %s259, 128, 128, 8
        $region36: #{tpu_custom_call.1} parent=31 // pred_fallthru
          _
        // Predicated region
        $region37: #{tpu_custom_call.1} parent=31 // pred_check
          %p282 = pneg %p72
        $region38: #{tpu_custom_call.1} parent=31 // pred_check_branch
          %284 = sbr.rel (%p282) target = $region40
        $region39: #{tpu_custom_call.1} parent=31 // pred_region
          %s285 = sand.u32 %s26, 1
          %s286 = scalar_lea.sflag [#allocation6], %s285
          %s287 = sand.u32 %s62, 1
          %s288 = smul.addr %s287, 16
          %s289 = scalar_lea.vmem [#allocation5], %s288
          %s290 = smul.u32 2, %s26
          %s291 = ssub.s32 3, %s290
          %p292 = scmp.lt.s32.totalorder %s291, 2
          %s293 = scalar_select %p292, %s291, 2
          %s294 = smul.u32 128, %s293
          %s296 = ssub.s32 256, %s294
          %297 = vsyncadd %s286, %s296
          %p298 = scmp.ne.s32.totalorder 0, %s294
          %s299 = smul.addr %s290, 128
          %s300 = scalar_lea.hbm %s1, %s299
          %s301 = smul.u32 8, %s293
          %s302 = sshll.u32 %s289, 4
          %s303 = int_to_ptr.vmem [resolvable:$true] %s302
          %s304 = sshll.u32 %s301, 4
          %308 = dma.hbm_to_vmem [thread:$0]  (%p298), %s300, %s304, %s303, %s286, 128, 128, 8
        $region40: #{tpu_custom_call.1} parent=31 // pred_fallthru
          _
      $region32: #{tpu_custom_call.1} parent=5 // pred_fallthru
        _
      %p309 = scmp.le.s32.totalorder 1, %s26
      %p310 = scmp.lt.s32.totalorder %s26, 3
      %p311 = pnand %p309, %p310
      %p312 = pneg %p311
      // Predicated region
      $region41: #{tpu_custom_call.1} parent=5 // pred_check
        _
      $region42: #{tpu_custom_call.1} parent=5 // pred_check_branch
        %314 = sbr.rel (%p311) target = $region44
      $region43: #{tpu_custom_call.1} parent=5 // pred_region
        %s315 = ssub.s32 %s26, 1
        %s316 = sand.u32 %s39, 1
        %s317 = scalar_lea.sflag [#allocation3], %s316
        %s318 = sand.u32 %s39, 1
        %s319 = smul.addr %s318, 16
        %s320 = scalar_lea.vmem [#allocation2], %s319
        // Predicated region
        $region45: #{tpu_custom_call.1} parent=43 // pred_check
          %p321 = pneg %p52
        $region46: #{tpu_custom_call.1} parent=43 // pred_check_branch
          %323 = sbr.rel (%p321) target = $region48
        $region47: #{tpu_custom_call.1} parent=43 // pred_region
          %324 = dma.done %s317, 256
        $region48: #{tpu_custom_call.1} parent=43 // pred_fallthru
          _
        %s325 = sand.u32 %s31, 1
        %s326 = scalar_lea.sflag [#allocation6], %s325
        %s327 = sand.u32 %s65, 1
        %s328 = smul.addr %s327, 16
        %s329 = scalar_lea.vmem [#allocation5], %s328
        // Predicated region
        $region49: #{tpu_custom_call.1} parent=43 // pred_check
          %p330 = pneg %p78
        $region50: #{tpu_custom_call.1} parent=43 // pred_check_branch
          %332 = sbr.rel (%p330) target = $region52
        $region51: #{tpu_custom_call.1} parent=43 // pred_region
          %333 = dma.done %s326, 256
        $region52: #{tpu_custom_call.1} parent=43 // pred_fallthru
          _
        // Predicated region
        $region53: #{tpu_custom_call.1} parent=43 // pred_check
          %p334 = pneg %p141
        $region54: #{tpu_custom_call.1} parent=43 // pred_check_branch
          %336 = sbr.rel (%p334) target = $region56
        $region55: #{tpu_custom_call.1} parent=43 // pred_region
          %337 = dma.done [#allocation6], 256
        $region56: #{tpu_custom_call.1} parent=43 // pred_fallthru
          _
        %s338 = sand.u32 %s39, 1
        %s339 = scalar_lea.sflag [#allocation3], %s338
        %s340 = sand.u32 %s39, 1
        %s341 = smul.addr %s340, 16
        %s342 = scalar_lea.vmem [#allocation2], %s341
        %p343 = pneg %p52
        %p344 = pneg %p49
        %s345 = sand.u32 %s31, 1
        %s346 = scalar_lea.sflag [#allocation6], %s345
        %s347 = sand.u32 %s65, 1
        %s348 = smul.addr %s347, 16
        %s349 = scalar_lea.vmem [#allocation5], %s348
        %p350 = pneg %p78
        %p351 = pneg %p75
        %p352 = pneg %p99
        %p353 = pneg %p96
        %p354 = pneg %p120
        %p355 = pneg %p117
        %p356 = pneg %p141
        %p357 = pneg %p138
        %p358 = pneg %p162
        %p359 = pneg %p159
        %p360 = pneg %p188
        %p361 = pneg %p185
        %s362 = sand.u32 %s175, 1
        %s363 = scalar_lea.sflag [#allocation4], %s362
        %s364 = sand.u32 %s175, 1
        %s365 = smul.addr %s364, 16
        %s366 = scalar_lea.vmem [#allocation8], %s365
        %p367 = pneg %p214
        %p368 = pneg %p211
        %s369 = sand.u32 %s201, 1
        %s370 = scalar_lea.sflag [#allocation10], %s369
        %s371 = sand.u32 %s201, 1
        %s372 = smul.addr %s371, 16
        %s373 = scalar_lea.vmem [#allocation9], %s372
        %s374 = smul.u32 2, %s31
        %s375 = ssub.s32 3, %s374
        %p376 = scmp.lt.s32.totalorder %s375, 2
        %s377 = scalar_select %p376, %s375, 2
        %s378 = smul.u32 128, %s377
        %s379 = smul.u32 2, %s31
        %s380 = ssub.s32 3, %s379
        %p381 = scmp.lt.s32.totalorder %s380, 2
        %s382 = scalar_select %p381, %s380, 2
        %s383 = smul.u32 128, %s382
        %s384 = smul.u32 2, %s31
        %s385 = ssub.s32 3, %s384
        %p386 = scmp.lt.s32.totalorder %s385, 2
        %s387 = scalar_select %p386, %s385, 2
        %s388 = smul.u32 128, %s387
        %s389 = smul.u32 2, %s31
        %s390 = ssub.s32 3, %s389
        %p391 = scmp.lt.s32.totalorder %s390, 2
        %s392 = scalar_select %p391, %s390, 2
        %s393 = smul.u32 128, %s392
        %v395 = vld [vmem:[%s329] sm:$0xff]
        %v396 = vld [vmem:[%s329 + $0x8] sm:$0xff]
        %v397 = vld [vmem:[%s320] sm:$0xff]
        %v398 = vld [vmem:[%s320 + $0x8] sm:$0xff]
        %v399 = vadd.f32 %v395, %v397
        %v400 = vadd.f32 %v396, %v398
        %vm401 = vcmask 261120
        %v402 = vsel %vm401, %v399, 0.0
        %403 = vadd.xlane.f32.xlu0 %v402
        %v404 = vpop.xlane.xlu0 %403
        %v405 = vsel %vm401, %v400, 0.0
        %406 = vadd.xlane.f32.xlu0 %v405
        %v407 = vpop.xlane.xlu0 %406
        %v408 = vrcp.pop 32.0
        %v409 = vmul.f32 %v404, %v408
        %v410 = vmul.f32 %v407, %v408
        %v411 = vsub.f32 %v399, %v409
        %v412 = vsub.f32 %v400, %v410
        %v413 = vmul.f32 %v411, %v411
        %v414 = vmul.f32 %v412, %v412
        %v415 = vsel %vm401, %v413, 0.0
        %416 = vadd.xlane.f32.xlu0 %v415
        %v417 = vpop.xlane.xlu0 %416
        %v418 = vsel %vm401, %v414, 0.0
        %419 = vadd.xlane.f32.xlu0 %v418
        %v420 = vpop.xlane.xlu0 %419
        %v421 = vmul.f32 %v417, %v408
        %v422 = vmul.f32 %v420, %v408
        %v423 = vadd.f32 %v421, 1e-05
        %v424 = vadd.f32 %v422, 1e-05
        %v425 = vrsqrt.pop %v423
        %v426 = vrsqrt.pop %v424
        %v427 = vmul.f32 %v411, %v425
        %v428 = vmul.f32 %v412, %v426
        %v429 = vld [vmem:[%s2] sm:$0x1]
        %v431 = vlaneseq
        %v432 = vshrl.u32 %v431, 7
        %v433 = vsub.s32 0, %v432
        %v434 = vrot.slane %v429, %v433
        %v436 = vmul.f32 %v427, %v434
        %v437 = vmul.f32 %v428, %v434
        %v438 = vld [vmem:[%s3] sm:$0x1]
        %v440 = vlaneseq
        %v441 = vshrl.u32 %v440, 7
        %v442 = vsub.s32 0, %v441
        %v443 = vrot.slane %v438, %v442
        %v445 = vadd.f32 %v436, %v443
        %v446 = vadd.f32 %v437, %v443
        %v447 = vpack.c.bf16 %v446, %v445
        %v448 = vld [vmem:[#allocation7] sm:$0xf]
        %v449 = vld [vmem:[#allocation7 + $0x4] sm:$0xf]
        %v450 = vld [vmem:[#allocation7 + $0x8] sm:$0xf]
        %v451 = vld [vmem:[#allocation7 + $0xc] sm:$0xf]
        %v452 = vld [vmem:[%s5] sm:$0x1]
        %v454 = vlaneseq
        %v455 = vshrl.u32 %v454, 7
        %v456 = vsub.s32 0, %v455
        %v457 = vrot.slane %v452, %v456
        %v463 = vunpack.c.l.b16 %v448
        %v464 = vunpack.c.l.b16 %v449
        %v465 = vunpack.c.l.b16 %v450
        %v466 = vunpack.c.l.b16 %v451
        %v467 = vpack.c.b16 %v464, %v463
        %v468 = vpack.c.b16 %v466, %v465
        %v472 = vsel %vm401, %v447, 0
        %474 = vmatprep.subr.bf16.mxu0 0
        %475 = vmatpush1.bf16.msra.mxu0 %v467
        %476 = vmatprep.subr.bf16.mxu0 0
        %477 = vmatpush1.bf16.msra.mxu0 %v468
        %478 = vmatprep.subr.bf16.mxu0 0
        %479 = vmatpush1.bf16.msra.mxu0 0
        %480 = vmatprep.subr.bf16.mxu0 0
        %481 = vmatpush1.bf16.msra.mxu0 0
        %482 = vmatprep.subr.bf16.mxu0 0
        %483 = vmatpush1.bf16.msra.mxu0 0
        %484 = vmatprep.subr.bf16.mxu0 0
        %485 = vmatpush1.bf16.msra.mxu0 0
        %486 = vmatprep.subr.bf16.mxu0 0
        %487 = vmatpush1.bf16.msra.mxu0 0
        %488 = vmatprep.subr.bf16.mxu0 0
        %489 = vmatpush1.bf16.msra.mxu0 0
        %490 = vmatprep.subr.bf16.mxu0 0
        %491 = vmatpush1.bf16.msra.mxu0 0
        %492 = vmatprep.subr.bf16.mxu0 0
        %493 = vmatpush1.bf16.msra.mxu0 0
        %494 = vmatprep.subr.bf16.mxu0 0
        %495 = vmatpush1.bf16.msra.mxu0 0
        %496 = vmatprep.subr.bf16.mxu0 0
        %497 = vmatpush1.bf16.msra.mxu0 0
        %498 = vmatprep.subr.bf16.mxu0 0
        %499 = vmatpush1.bf16.msra.mxu0 0
        %500 = vmatprep.subr.bf16.mxu0 0
        %501 = vmatpush1.bf16.msra.mxu0 0
        %502 = vmatprep.subr.bf16.mxu0 0
        %503 = vmatpush1.bf16.msra.mxu0 0
        %504 = vmatprep.subr.bf16.mxu0 0
        %505 = vmatpush1.bf16.msra.mxu0 0
        %506 = vmatprep.mubr.bf16.mxu0 0
        %507 = vmatmul.mubr.bf16.gmra.mrb[0].mxu0 %v472
        %v508 = vpop.f32.mrb[0].mxu0
        %v509 = vadd.f32 %v457, %v508
        %v510 = vpop.f32.mrb[0].mxu0
        %v511 = vpop.f32.mrb[0].mxu0
        %v512 = vadd.f32 %v457, %v511
        %v513 = vpop.f32.mrb[0].mxu0
        %514 = vdwg.mxu0
        %515 = vst.msk [vmem:[%s366] sm:$0xff] %vm401, %v509
        %516 = vst.msk [vmem:[%s366 + $0x8] sm:$0xff] %vm401, %v512
        %517 = vst.msk [vmem:[%s373] sm:$0xff] %vm401, %v399
        %518 = vst.msk [vmem:[%s373 + $0x8] sm:$0xff] %vm401, %v400
        %s519 = sand.u32 %s175, 1
        %s520 = scalar_lea.sflag [#allocation4], %s519
        %s521 = sand.u32 %s175, 1
        %s522 = smul.addr %s521, 16
        %s523 = scalar_lea.vmem [#allocation8], %s522
        %s524 = sand.u32 %s201, 1
        %s525 = scalar_lea.sflag [#allocation10], %s524
        %s526 = sand.u32 %s201, 1
        %s527 = smul.addr %s526, 16
        %s528 = scalar_lea.vmem [#allocation9], %s527
        // Predicated region
        $region57: #{tpu_custom_call.1} parent=43 // pred_check
          %p529 = pneg %p185
        $region58: #{tpu_custom_call.1} parent=43 // pred_check_branch
          %531 = sbr.rel (%p529) target = $region60
        $region59: #{tpu_custom_call.1} parent=43 // pred_region
          %s532 = smul.u32 2, %s31
          %s533 = ssub.s32 3, %s532
          %p534 = scmp.lt.s32.totalorder %s533, 2
          %s535 = scalar_select %p534, %s533, 2
          %s536 = smul.u32 128, %s535
          %s538 = ssub.s32 256, %s536
          %539 = vsyncadd %s520, %s538
          %p540 = scmp.ne.s32.totalorder 0, %s536
          %s541 = smul.addr %s532, 128
          %s542 = scalar_lea.hbm %s6, %s541
          %s543 = smul.u32 8, %s535
          %s544 = sshll.u32 %s523, 4
          %s545 = int_to_ptr.vmem [resolvable:$true] %s544
          %s546 = sshll.u32 %s543, 4
          %550 = dma.vmem_to_hbm [thread:$0]  (%p540), %s545, %s546, %s542, %s520, 128, 128, 8
        $region60: #{tpu_custom_call.1} parent=43 // pred_fallthru
          _
        // Predicated region
        $region61: #{tpu_custom_call.1} parent=43 // pred_check
          %p551 = pneg %p211
        $region62: #{tpu_custom_call.1} parent=43 // pred_check_branch
          %553 = sbr.rel (%p551) target = $region64
        $region63: #{tpu_custom_call.1} parent=43 // pred_region
          %s554 = smul.u32 2, %s31
          %s555 = ssub.s32 3, %s554
          %p556 = scmp.lt.s32.totalorder %s555, 2
          %s557 = scalar_select %p556, %s555, 2
          %s558 = smul.u32 128, %s557
          %s560 = ssub.s32 256, %s558
          %561 = vsyncadd %s525, %s560
          %p562 = scmp.ne.s32.totalorder 0, %s558
          %s563 = smul.addr %s554, 128
          %s564 = scalar_lea.hbm %s7, %s563
          %s565 = smul.u32 8, %s557
          %s566 = sshll.u32 %s528, 4
          %s567 = int_to_ptr.vmem [resolvable:$true] %s566
          %s568 = sshll.u32 %s565, 4
          %572 = dma.vmem_to_hbm [thread:$0]  (%p562), %s567, %s568, %s564, %s525, 128, 128, 8
        $region64: #{tpu_custom_call.1} parent=43 // pred_fallthru
          _
      $region44: #{tpu_custom_call.1} parent=5 // pred_fallthru
        _
      %p573 = scmp.le.s32.totalorder 2, %s26
      // Predicated region
      $region65: #{tpu_custom_call.1} parent=5 // pred_check
        %p574 = pneg %p573
      $region66: #{tpu_custom_call.1} parent=5 // pred_check_branch
        %576 = sbr.rel (%p574) target = $region68
      $region67: #{tpu_custom_call.1} parent=5 // pred_region
        %s577 = ssub.s32 %s26, 2
        // Predicated region
        $region69: #{tpu_custom_call.1} parent=67 // pred_check
          %p578 = pneg %p191
        $region70: #{tpu_custom_call.1} parent=67 // pred_check_branch
          %580 = sbr.rel (%p578) target = $region72
        $region71: #{tpu_custom_call.1} parent=67 // pred_region
          %s581 = sand.u32 %s176, 1
          %s582 = scalar_lea.sflag [#allocation4], %s581
          %s583 = sand.u32 %s176, 1
          %s584 = smul.addr %s583, 16
          %s585 = scalar_lea.vmem [#allocation8], %s584
          %586 = dma.done %s582, 256
        $region72: #{tpu_custom_call.1} parent=67 // pred_fallthru
          _
        // Predicated region
        $region73: #{tpu_custom_call.1} parent=67 // pred_check
          %p587 = pneg %p217
        $region74: #{tpu_custom_call.1} parent=67 // pred_check_branch
          %589 = sbr.rel (%p587) target = $region76
        $region75: #{tpu_custom_call.1} parent=67 // pred_region
          %s590 = sand.u32 %s202, 1
          %s591 = scalar_lea.sflag [#allocation10], %s590
          %s592 = sand.u32 %s202, 1
          %s593 = smul.addr %s592, 16
          %s594 = scalar_lea.vmem [#allocation9], %s593
          %595 = dma.done %s591, 256
        $region76: #{tpu_custom_call.1} parent=67 // pred_fallthru
          _
      $region68: #{tpu_custom_call.1} parent=5 // pred_fallthru
        _
    $region6: #{tpu_custom_call.1} parent=1 // loop_footer
      %s30 = sadd.s32 1, %s26
    $region7: #{tpu_custom_call.1} parent=1 // loop_footer_branch
      %25 = sbr.rel target = $region3
    $region8: #{tpu_custom_call.1} parent=1 // loop_exit
      _
    %596 = vsyncpa [#allocation3], 1
    %s597 = scalar_lea.sflag [#allocation3], 1
    %598 = vsyncpa %s597, 1
    %599 = vsyncpa [#allocation6], 1
    %s600 = scalar_lea.sflag [#allocation6], 1
    %601 = vsyncpa %s600, 1
    %602 = vsyncpa [#allocation4], 1
    %s603 = scalar_lea.sflag [#allocation4], 1
    %604 = vsyncpa %s603, 1
    %605 = vsyncpa [#allocation10], 1
    %s606 = scalar_lea.sflag [#allocation10], 1
    %607 = vsyncpa %s606, 1

// kernel: tpu_custom_call.1
$region0: #{tpu_custom_call.1}
  #allocation0 [shape = 'u32[]', space=smem, size = 0x4, offset = 0x4, fixed_abs, tag = 'smem constant byte address 0x4 - core index']
  #allocation1 [shape = 'u32[144,128]{1,0:T(1,128)}', space=vmem, size = 0x12000, scoped, tag = 'internal scratch']
  %s0 = inlined_call_operand.hbm [shape: f32[18,32], index: 0, kind: input, shape index: {}]
  %s1 = inlined_call_operand.hbm [shape: f32[18,32], index: 1, kind: input, shape index: {}]
  %s2 = inlined_call_operand.vmem [shape: f32[1,32], index: 2, kind: input, shape index: {}]
  %s3 = inlined_call_operand.vmem [shape: f32[1,32], index: 3, kind: input, shape index: {}]
  %s4 = inlined_call_operand.hbm [shape: bf16[32,32], index: 4, kind: input, shape index: {}]
  %s5 = inlined_call_operand.vmem [shape: f32[1,32], index: 5, kind: input, shape index: {}]
  %s6 = inlined_call_operand.hbm [shape: f32[18,32], index: 6, kind: output, shape index: {0}]
  %s7 = inlined_call_operand.hbm [shape: f32[18,32], index: 7, kind: output, shape index: {1}]
  %8 = xla_tuple %s6, %s7
  %s9 = sld [smem:[#allocation0]]
  $region77: #{tpu_custom_call.1} parent=0
    _
  %s11 = ssub.s32 1, %s9
  %s12 = scalar_select 0, %s11, %s9
  $region1: #{tpu_custom_call.1} parent=0
    #allocation2 [shape = 'u8[16384]{0}', space=vmem, size = 0x4000, scoped, tag = 'input window, operand 0']
    #allocation3 [shape = 's32[2]{0}', space=sflag, size = 0x8, scoped, tag = 'scoped memory for tpu_custom_call.1']
    #allocation4 [shape = 's32[2]{0}', space=sflag, size = 0x8, scoped, tag = 'scoped memory for tpu_custom_call.1']
    #allocation5 [shape = 'u8[16384]{0}', space=vmem, size = 0x4000, scoped, tag = 'input window, operand 1']
    #allocation6 [shape = 's32[2]{0}', space=sflag, size = 0x8, scoped, tag = 'scoped memory for tpu_custom_call.1']
    #allocation7 [shape = 'u8[8192]{0}', space=vmem, size = 0x2000, scoped, tag = 'input window, operand 4, single buffered']
    #allocation8 [shape = 'u8[16384]{0}', space=vmem, size = 0x4000, scoped, tag = 'output window, operand 0']
    #allocation9 [shape = 'u8[16384]{0}', space=vmem, size = 0x4000, scoped, tag = 'output window, operand 1']
    #allocation10 [shape = 's32[2]{0}', space=sflag, size = 0x8, scoped, tag = 'scoped memory for tpu_custom_call.1']
    %13 = vsyncpa [#allocation3], 0
    %s14 = scalar_lea.sflag [#allocation3], 1
    %15 = vsyncpa %s14, 0
    %16 = vsyncpa [#allocation6], 0
    %s17 = scalar_lea.sflag [#allocation6], 1
    %18 = vsyncpa %s17, 0
    %19 = vsyncpa [#allocation4], 0
    %s20 = scalar_lea.sflag [#allocation4], 1
    %21 = vsyncpa %s20, 0
    %22 = vsyncpa [#allocation10], 0
    %s23 = scalar_lea.sflag [#allocation10], 1
    %24 = vsyncpa %s23, 0
    loop: start=0, step=1, limit=4
    $region2: #{tpu_custom_call.1} parent=1 // loop_pre_header
      _
    $region3: #{tpu_custom_call.1} parent=1 // loop_header
      %s26 = sphi 0, %s30
      %p27 = scmp.ge.s32.totalorder %s26, 4
      %s36 = sphi 0, %s38
      %s39 = sphi 0, %s36
      %s40 = sphi 0, %s39
      %s56 = sphi 0, %s40
      %s62 = sphi 0, %s64
      %s65 = sphi 0, %s62
      %s66 = sphi 0, %s65
      %s82 = sphi 0, %s66
      %s86 = sphi 0, %s86
      %s88 = sphi 0, %s86
      %s89 = sphi 0, %s88
      %s103 = sphi 0, %s89
      %s107 = sphi 0, %s107
      %s109 = sphi 0, %s107
      %s110 = sphi 0, %s109
      %s124 = sphi 0, %s110
      %s128 = sphi 0, %s128
      %s130 = sphi 0, %s128
      %s131 = sphi 0, %s130
      %s145 = sphi 0, %s131
      %s149 = sphi 0, %s149
      %s151 = sphi 0, %s149
      %s152 = sphi 0, %s151
      %s166 = sphi 0, %s152
      %s172 = sphi 0, %s174
      %s175 = sphi 0, %s172
      %s176 = sphi 0, %s175
      %s192 = sphi 0, %s176
      %s198 = sphi 0, %s200
      %s201 = sphi 0, %s198
      %s202 = sphi 0, %s201
      %s218 = sphi 0, %s202
    $region4: #{tpu_custom_call.1} parent=1 // loop_header_branch
      %29 = sbr.rel (%p27) target = $region8
    $region5: #{tpu_custom_call.1} parent=1 // loop_body
      %s31 = ssub.s32 %s26, 1
      %s32 = ssub.s32 %s26, 2
      %s33 = sadd.s32 %s26, 1
      %s34 = ssub.s32 %s26, %s33
      %p35 = scmp.eq.s32.totalorder %s34, 0
      %s37 = sadd.s32 %s36, 1
      %s38 = scalar_select %p35, %s36, %s37
      %p41 = pneg %p35
      %p42 = scmp.eq.s32.totalorder %s26, 1
      %p43 = por %p41, %p42
      %p44 = scmp.ne.s32.totalorder %s36, %s39
      %p45 = scmp.eq.s32.totalorder %s26, 0
      %p46 = por %p44, %p45
      %p47 = scmp.ne.s32.totalorder %s36, %s39
      %p48 = scmp.eq.s32.totalorder %s31, 1
      %p49 = por %p47, %p48
      %p50 = scmp.ne.s32.totalorder %s39, %s40
      %p51 = scmp.eq.s32.totalorder %s31, 0
      %p52 = por %p50, %p51
      %p53 = scmp.ne.s32.totalorder %s39, %s40
      %p54 = scmp.eq.s32.totalorder %s32, 1
      %p55 = por %p53, %p54
      %p57 = scmp.ne.s32.totalorder %s40, %s56
      %p58 = scmp.eq.s32.totalorder %s32, 0
      %p59 = por %p57, %p58
      %s60 = ssub.s32 %s26, %s33
      %p61 = scmp.eq.s32.totalorder %s60, 0
      %s63 = sadd.s32 %s62, 1
      %s64 = scalar_select %p61, %s62, %s63
      %p67 = pneg %p61
      %p68 = scmp.eq.s32.totalorder %s26, 1
      %p69 = por %p67, %p68
      %p70 = scmp.ne.s32.totalorder %s62, %s65
      %p71 = scmp.eq.s32.totalorder %s26, 0
      %p72 = por %p70, %p71
      %p73 = scmp.ne.s32.totalorder %s62, %s65
      %p74 = scmp.eq.s32.totalorder %s31, 1
      %p75 = por %p73, %p74
      %p76 = scmp.ne.s32.totalorder %s65, %s66
      %p77 = scmp.eq.s32.totalorder %s31, 0
      %p78 = por %p76, %p77
      %p79 = scmp.ne.s32.totalorder %s65, %s66
      %p80 = scmp.eq.s32.totalorder %s32, 1
      %p81 = por %p79, %p80
      %p83 = scmp.ne.s32.totalorder %s66, %s82
      %p84 = scmp.eq.s32.totalorder %s32, 0
      %p85 = por %p83, %p84
      %s87 = sadd.s32 %s86, 1
      %p90 = scmp.eq.s32.totalorder %s26, 1
      %p91 = scmp.ne.s32.totalorder %s86, %s88
      %p92 = scmp.eq.s32.totalorder %s26, 0
      %p93 = por %p91, %p92
      %p94 = scmp.ne.s32.totalorder %s86, %s88
      %p95 = scmp.eq.s32.totalorder %s31, 1
      %p96 = por %p94, %p95
      %p97 = scmp.ne.s32.totalorder %s88, %s89
      %p98 = scmp.eq.s32.totalorder %s31, 0
      %p99 = por %p97, %p98
      %p100 = scmp.ne.s32.totalorder %s88, %s89
      %p101 = scmp.eq.s32.totalorder %s32, 1
      %p102 = por %p100, %p101
      %p104 = scmp.ne.s32.totalorder %s89, %s103
      %p105 = scmp.eq.s32.totalorder %s32, 0
      %p106 = por %p104, %p105
      %s108 = sadd.s32 %s107, 1
      %p111 = scmp.eq.s32.totalorder %s26, 1
      %p112 = scmp.ne.s32.totalorder %s107, %s109
      %p113 = scmp.eq.s32.totalorder %s26, 0
      %p114 = por %p112, %p113
      %p115 = scmp.ne.s32.totalorder %s107, %s109
      %p116 = scmp.eq.s32.totalorder %s31, 1
      %p117 = por %p115, %p116
      %p118 = scmp.ne.s32.totalorder %s109, %s110
      %p119 = scmp.eq.s32.totalorder %s31, 0
      %p120 = por %p118, %p119
      %p121 = scmp.ne.s32.totalorder %s109, %s110
      %p122 = scmp.eq.s32.totalorder %s32, 1
      %p123 = por %p121, %p122
      %p125 = scmp.ne.s32.totalorder %s110, %s124
      %p126 = scmp.eq.s32.totalorder %s32, 0
      %p127 = por %p125, %p126
      %s129 = sadd.s32 %s128, 1
      %p132 = scmp.eq.s32.totalorder %s26, 1
      %p133 = scmp.ne.s32.totalorder %s128, %s130
      %p134 = scmp.eq.s32.totalorder %s26, 0
      %p135 = por %p133, %p134
      %p136 = scmp.ne.s32.totalorder %s128, %s130
      %p137 = scmp.eq.s32.totalorder %s31, 1
      %p138 = por %p136, %p137
      %p139 = scmp.ne.s32.totalorder %s130, %s131
      %p140 = scmp.eq.s32.totalorder %s31, 0
      %p141 = por %p139, %p140
      %p142 = scmp.ne.s32.totalorder %s130, %s131
      %p143 = scmp.eq.s32.totalorder %s32, 1
      %p144 = por %p142, %p143
      %p146 = scmp.ne.s32.totalorder %s131, %s145
      %p147 = scmp.eq.s32.totalorder %s32, 0
      %p148 = por %p146, %p147
      %s150 = sadd.s32 %s149, 1
      %p153 = scmp.eq.s32.totalorder %s26, 1
      %p154 = scmp.ne.s32.totalorder %s149, %s151
      %p155 = scmp.eq.s32.totalorder %s26, 0
      %p156 = por %p154, %p155
      %p157 = scmp.ne.s32.totalorder %s149, %s151
      %p158 = scmp.eq.s32.totalorder %s31, 1
      %p159 = por %p157, %p158
      %p160 = scmp.ne.s32.totalorder %s151, %s152
      %p161 = scmp.eq.s32.totalorder %s31, 0
      %p162 = por %p160, %p161
      %p163 = scmp.ne.s32.totalorder %s151, %s152
      %p164 = scmp.eq.s32.totalorder %s32, 1
      %p165 = por %p163, %p164
      %p167 = scmp.ne.s32.totalorder %s152, %s166
      %p168 = scmp.eq.s32.totalorder %s32, 0
      %p169 = por %p167, %p168
      %s170 = ssub.s32 %s26, %s33
      %p171 = scmp.eq.s32.totalorder %s170, 0
      %s173 = sadd.s32 %s172, 1
      %s174 = scalar_select %p171, %s172, %s173
      %p177 = pneg %p171
      %p178 = scmp.eq.s32.totalorder %s26, 1
      %p179 = por %p177, %p178
      %p180 = scmp.ne.s32.totalorder %s172, %s175
      %p181 = scmp.eq.s32.totalorder %s26, 0
      %p182 = por %p180, %p181
      %p183 = scmp.ne.s32.totalorder %s172, %s175
      %p184 = scmp.eq.s32.totalorder %s31, 1
      %p185 = por %p183, %p184
      %p186 = scmp.ne.s32.totalorder %s175, %s176
      %p187 = scmp.eq.s32.totalorder %s31, 0
      %p188 = por %p186, %p187
      %p189 = scmp.ne.s32.totalorder %s175, %s176
      %p190 = scmp.eq.s32.totalorder %s32, 1
      %p191 = por %p189, %p190
      %p193 = scmp.ne.s32.totalorder %s176, %s192
      %p194 = scmp.eq.s32.totalorder %s32, 0
      %p195 = por %p193, %p194
      %s196 = ssub.s32 %s26, %s33
      %p197 = scmp.eq.s32.totalorder %s196, 0
      %s199 = sadd.s32 %s198, 1
      %s200 = scalar_select %p197, %s198, %s199
      %p203 = pneg %p197
      %p204 = scmp.eq.s32.totalorder %s26, 1
      %p205 = por %p203, %p204
      %p206 = scmp.ne.s32.totalorder %s198, %s201
      %p207 = scmp.eq.s32.totalorder %s26, 0
      %p208 = por %p206, %p207
      %p209 = scmp.ne.s32.totalorder %s198, %s201
      %p210 = scmp.eq.s32.totalorder %s31, 1
      %p211 = por %p209, %p210
      %p212 = scmp.ne.s32.totalorder %s201, %s202
      %p213 = scmp.eq.s32.totalorder %s31, 0
      %p214 = por %p212, %p213
      %p215 = scmp.ne.s32.totalorder %s201, %s202
      %p216 = scmp.eq.s32.totalorder %s32, 1
      %p217 = por %p215, %p216
      %p219 = scmp.ne.s32.totalorder %s202, %s218
      %p220 = scmp.eq.s32.totalorder %s32, 0
      %p221 = por %p219, %p220
      %p222 = scmp.le.s32.totalorder 1, %s26
      %p223 = scmp.lt.s32.totalorder %s26, 3
      %p224 = pnand %p222, %p223
      %p225 = pneg %p224
      // Predicated region
      $region9: #{tpu_custom_call.1} parent=5 // pred_check
        _
      $region10: #{tpu_custom_call.1} parent=5 // pred_check_branch
        %227 = sbr.rel (%p224) target = $region12
      $region11: #{tpu_custom_call.1} parent=5 // pred_region
        %s228 = ssub.s32 %s26, 1
        // Predicated region
        $region13: #{tpu_custom_call.1} parent=11 // pred_check
          %p229 = pneg %p99
        $region14: #{tpu_custom_call.1} parent=11 // pred_check_branch
          %231 = sbr.rel (%p229) target = $region16
        $region15: #{tpu_custom_call.1} parent=11 // pred_region
          _
        $region16: #{tpu_custom_call.1} parent=11 // pred_fallthru
          _
        // Predicated region
        $region17: #{tpu_custom_call.1} parent=11 // pred_check
          %p232 = pneg %p120
        $region18: #{tpu_custom_call.1} parent=11 // pred_check_branch
          %234 = sbr.rel (%p232) target = $region20
        $region19: #{tpu_custom_call.1} parent=11 // pred_region
          _
        $region20: #{tpu_custom_call.1} parent=11 // pred_fallthru
          _
        // Predicated region
        $region21: #{tpu_custom_call.1} parent=11 // pred_check
          %p235 = pneg %p141
        $region22: #{tpu_custom_call.1} parent=11 // pred_check_branch
          %237 = sbr.rel (%p235) target = $region24
        $region23: #{tpu_custom_call.1} parent=11 // pred_region
          %s239 = ssub.s32 256, 256
          %240 = vsyncadd [#allocation6], %s239
          %s241 = sshll.u32 [#allocation7], 4
          %s242 = int_to_ptr.vmem [resolvable:$true] %s241
          %247 = dma.hbm_to_vmem [thread:$0]  %s4, 256, %s242, [#allocation6], 64, 64, 4
        $region24: #{tpu_custom_call.1} parent=11 // pred_fallthru
          _
        // Predicated region
        $region25: #{tpu_custom_call.1} parent=11 // pred_check
          %p248 = pneg %p162
        $region26: #{tpu_custom_call.1} parent=11 // pred_check_branch
          %250 = sbr.rel (%p248) target = $region28
        $region27: #{tpu_custom_call.1} parent=11 // pred_region
          _
        $region28: #{tpu_custom_call.1} parent=11 // pred_fallthru
          _
      $region12: #{tpu_custom_call.1} parent=5 // pred_fallthru
        _
      %p251 = scmp.lt.s32.totalorder %s26, 2
      // Predicated region
      $region29: #{tpu_custom_call.1} parent=5 // pred_check
        %p252 = pneg %p251
      $region30: #{tpu_custom_call.1} parent=5 // pred_check_branch
        %254 = sbr.rel (%p252) target = $region32
      $region31: #{tpu_custom_call.1} parent=5 // pred_region
        // Predicated region
        $region33: #{tpu_custom_call.1} parent=31 // pred_check
          %p255 = pneg %p46
        $region34: #{tpu_custom_call.1} parent=31 // pred_check_branch
          %257 = sbr.rel (%p255) target = $region36
        $region35: #{tpu_custom_call.1} parent=31 // pred_region
          %s258 = sand.u32 %s36, 1
          %s259 = scalar_lea.sflag [#allocation3], %s258
          %s260 = sand.u32 %s36, 1
          %s261 = smul.addr %s260, 16
          %s262 = scalar_lea.vmem [#allocation2], %s261
          %s263 = smul.u32 2, %s26
          %s264 = ssub.s32 3, %s263
          %p265 = scmp.lt.s32.totalorder %s264, 2
          %s266 = scalar_select %p265, %s264, 2
          %s267 = smul.u32 128, %s266
          %s269 = ssub.s32 256, %s267
          %270 = vsyncadd %s259, %s269
          %p271 = scmp.ne.s32.totalorder 0, %s267
          %s272 = smul.addr %s263, 128
          %s273 = scalar_lea.hbm %s0, %s272
          %s274 = smul.u32 8, %s266
          %s275 = sshll.u32 %s262, 4
          %s276 = int_to_ptr.vmem [resolvable:$true] %s275
          %s277 = sshll.u32 %s274, 4
          %281 = dma.hbm_to_vmem [thread:$0]  (%p271), %s273, %s277, %s276, %s259, 128, 128, 8
        $region36: #{tpu_custom_call.1} parent=31 // pred_fallthru
          _
        // Predicated region
        $region37: #{tpu_custom_call.1} parent=31 // pred_check
          %p282 = pneg %p72
        $region38: #{tpu_custom_call.1} parent=31 // pred_check_branch
          %284 = sbr.rel (%p282) target = $region40
        $region39: #{tpu_custom_call.1} parent=31 // pred_region
          %s285 = sand.u32 %s26, 1
          %s286 = scalar_lea.sflag [#allocation6], %s285
          %s287 = sand.u32 %s62, 1
          %s288 = smul.addr %s287, 16
          %s289 = scalar_lea.vmem [#allocation5], %s288
          %s290 = smul.u32 2, %s26
          %s291 = ssub.s32 3, %s290
          %p292 = scmp.lt.s32.totalorder %s291, 2
          %s293 = scalar_select %p292, %s291, 2
          %s294 = smul.u32 128, %s293
          %s296 = ssub.s32 256, %s294
          %297 = vsyncadd %s286, %s296
          %p298 = scmp.ne.s32.totalorder 0, %s294
          %s299 = smul.addr %s290, 128
          %s300 = scalar_lea.hbm %s1, %s299
          %s301 = smul.u32 8, %s293
          %s302 = sshll.u32 %s289, 4
          %s303 = int_to_ptr.vmem [resolvable:$true] %s302
          %s304 = sshll.u32 %s301, 4
          %308 = dma.hbm_to_vmem [thread:$0]  (%p298), %s300, %s304, %s303, %s286, 128, 128, 8
        $region40: #{tpu_custom_call.1} parent=31 // pred_fallthru
          _
      $region32: #{tpu_custom_call.1} parent=5 // pred_fallthru
        _
      %p309 = scmp.le.s32.totalorder 1, %s26
      %p310 = scmp.lt.s32.totalorder %s26, 3
      %p311 = pnand %p309, %p310
      %p312 = pneg %p311
      // Predicated region
      $region41: #{tpu_custom_call.1} parent=5 // pred_check
        _
      $region42: #{tpu_custom_call.1} parent=5 // pred_check_branch
        %314 = sbr.rel (%p311) target = $region44
      $region43: #{tpu_custom_call.1} parent=5 // pred_region
        %s315 = ssub.s32 %s26, 1
        %s316 = sand.u32 %s39, 1
        %s317 = scalar_lea.sflag [#allocation3], %s316
        %s318 = sand.u32 %s39, 1
        %s319 = smul.addr %s318, 16
        %s320 = scalar_lea.vmem [#allocation2], %s319
        // Predicated region
        $region45: #{tpu_custom_call.1} parent=43 // pred_check
          %p321 = pneg %p52
        $region46: #{tpu_custom_call.1} parent=43 // pred_check_branch
          %323 = sbr.rel (%p321) target = $region48
        $region47: #{tpu_custom_call.1} parent=43 // pred_region
          %324 = dma.done %s317, 256
        $region48: #{tpu_custom_call.1} parent=43 // pred_fallthru
          _
        %s325 = sand.u32 %s31, 1
        %s326 = scalar_lea.sflag [#allocation6], %s325
        %s327 = sand.u32 %s65, 1
        %s328 = smul.addr %s327, 16
        %s329 = scalar_lea.vmem [#allocation5], %s328
        // Predicated region
        $region49: #{tpu_custom_call.1} parent=43 // pred_check
          %p330 = pneg %p78
        $region50: #{tpu_custom_call.1} parent=43 // pred_check_branch
          %332 = sbr.rel (%p330) target = $region52
        $region51: #{tpu_custom_call.1} parent=43 // pred_region
          %333 = dma.done %s326, 256
        $region52: #{tpu_custom_call.1} parent=43 // pred_fallthru
          _
        // Predicated region
        $region53: #{tpu_custom_call.1} parent=43 // pred_check
          %p334 = pneg %p141
        $region54: #{tpu_custom_call.1} parent=43 // pred_check_branch
          %336 = sbr.rel (%p334) target = $region56
        $region55: #{tpu_custom_call.1} parent=43 // pred_region
          %337 = dma.done [#allocation6], 256
        $region56: #{tpu_custom_call.1} parent=43 // pred_fallthru
          _
        %s338 = sand.u32 %s39, 1
        %s339 = scalar_lea.sflag [#allocation3], %s338
        %s340 = sand.u32 %s39, 1
        %s341 = smul.addr %s340, 16
        %s342 = scalar_lea.vmem [#allocation2], %s341
        %p343 = pneg %p52
        %p344 = pneg %p49
        %s345 = sand.u32 %s31, 1
        %s346 = scalar_lea.sflag [#allocation6], %s345
        %s347 = sand.u32 %s65, 1
        %s348 = smul.addr %s347, 16
        %s349 = scalar_lea.vmem [#allocation5], %s348
        %p350 = pneg %p78
        %p351 = pneg %p75
        %p352 = pneg %p99
        %p353 = pneg %p96
        %p354 = pneg %p120
        %p355 = pneg %p117
        %p356 = pneg %p141
        %p357 = pneg %p138
        %p358 = pneg %p162
        %p359 = pneg %p159
        %p360 = pneg %p188
        %p361 = pneg %p185
        %s362 = sand.u32 %s175, 1
        %s363 = scalar_lea.sflag [#allocation4], %s362
        %s364 = sand.u32 %s175, 1
        %s365 = smul.addr %s364, 16
        %s366 = scalar_lea.vmem [#allocation8], %s365
        %p367 = pneg %p214
        %p368 = pneg %p211
        %s369 = sand.u32 %s201, 1
        %s370 = scalar_lea.sflag [#allocation10], %s369
        %s371 = sand.u32 %s201, 1
        %s372 = smul.addr %s371, 16
        %s373 = scalar_lea.vmem [#allocation9], %s372
        %s374 = smul.u32 2, %s31
        %s375 = ssub.s32 3, %s374
        %p376 = scmp.lt.s32.totalorder %s375, 2
        %s377 = scalar_select %p376, %s375, 2
        %s378 = smul.u32 128, %s377
        %s379 = smul.u32 2, %s31
        %s380 = ssub.s32 3, %s379
        %p381 = scmp.lt.s32.totalorder %s380, 2
        %s382 = scalar_select %p381, %s380, 2
        %s383 = smul.u32 128, %s382
        %s384 = smul.u32 2, %s31
        %s385 = ssub.s32 3, %s384
        %p386 = scmp.lt.s32.totalorder %s385, 2
        %s387 = scalar_select %p386, %s385, 2
        %s388 = smul.u32 128, %s387
        %s389 = smul.u32 2, %s31
        %s390 = ssub.s32 3, %s389
        %p391 = scmp.lt.s32.totalorder %s390, 2
        %s392 = scalar_select %p391, %s390, 2
        %s393 = smul.u32 128, %s392
        %v395 = vld [vmem:[%s329] sm:$0xff]
        %v396 = vld [vmem:[%s329 + $0x8] sm:$0xff]
        %v397 = vld [vmem:[%s320] sm:$0xff]
        %v398 = vld [vmem:[%s320 + $0x8] sm:$0xff]
        %v399 = vadd.f32 %v395, %v397
        %v400 = vadd.f32 %v396, %v398
        %vm401 = vcmask 261120
        %v402 = vsel %vm401, %v399, 0.0
        %403 = vadd.xlane.f32.xlu0 %v402
        %v404 = vpop.xlane.xlu0 %403
        %v405 = vsel %vm401, %v400, 0.0
        %406 = vadd.xlane.f32.xlu0 %v405
        %v407 = vpop.xlane.xlu0 %406
        %v408 = vrcp.pop 32.0
        %v409 = vmul.f32 %v404, %v408
        %v410 = vmul.f32 %v407, %v408
        %v411 = vsub.f32 %v399, %v409
        %v412 = vsub.f32 %v400, %v410
        %v413 = vmul.f32 %v411, %v411
        %v414 = vmul.f32 %v412, %v412
        %v415 = vsel %vm401, %v413, 0.0
        %416 = vadd.xlane.f32.xlu0 %v415
        %v417 = vpop.xlane.xlu0 %416
        %v418 = vsel %vm401, %v414, 0.0
        %419 = vadd.xlane.f32.xlu0 %v418
        %v420 = vpop.xlane.xlu0 %419
        %v421 = vmul.f32 %v417, %v408
        %v422 = vmul.f32 %v420, %v408
        %v423 = vadd.f32 %v421, 1e-05
        %v424 = vadd.f32 %v422, 1e-05
        %v425 = vrsqrt.pop %v423
        %v426 = vrsqrt.pop %v424
        %v427 = vmul.f32 %v411, %v425
        %v428 = vmul.f32 %v412, %v426
        %v429 = vld [vmem:[%s2] sm:$0x1]
        %v431 = vlaneseq
        %v432 = vshrl.u32 %v431, 7
        %v433 = vsub.s32 0, %v432
        %v434 = vrot.slane %v429, %v433
        %v436 = vmul.f32 %v427, %v434
        %v437 = vmul.f32 %v428, %v434
        %v438 = vld [vmem:[%s3] sm:$0x1]
        %v440 = vlaneseq
        %v441 = vshrl.u32 %v440, 7
        %v442 = vsub.s32 0, %v441
        %v443 = vrot.slane %v438, %v442
        %v445 = vadd.f32 %v436, %v443
        %v446 = vadd.f32 %v437, %v443
        %v447 = vpack.c.bf16 %v446, %v445
        %v448 = vld [vmem:[#allocation7] sm:$0xf]
        %v449 = vld [vmem:[#allocation7 + $0x4] sm:$0xf]
        %v450 = vld [vmem:[#allocation7 + $0x8] sm:$0xf]
        %v451 = vld [vmem:[#allocation7 + $0xc] sm:$0xf]
        %v452 = vld [vmem:[%s5] sm:$0x1]
        %v454 = vlaneseq
        %v455 = vshrl.u32 %v454, 7
        %v456 = vsub.s32 0, %v455
        %v457 = vrot.slane %v452, %v456
        %v463 = vunpack.c.l.b16 %v448
        %v464 = vunpack.c.l.b16 %v449
        %v465 = vunpack.c.l.b16 %v450
        %v466 = vunpack.c.l.b16 %v451
        %v467 = vpack.c.b16 %v464, %v463
        %v468 = vpack.c.b16 %v466, %v465
        %v472 = vsel %vm401, %v447, 0
        %474 = vmatprep.subr.bf16.mxu0 0
        %475 = vmatpush1.bf16.msra.mxu0 %v467
        %476 = vmatprep.subr.bf16.mxu0 0
        %477 = vmatpush1.bf16.msra.mxu0 %v468
        %478 = vmatprep.subr.bf16.mxu0 0
        %479 = vmatpush1.bf16.msra.mxu0 0
        %480 = vmatprep.subr.bf16.mxu0 0
        %481 = vmatpush1.bf16.msra.mxu0 0
        %482 = vmatprep.subr.bf16.mxu0 0
        %483 = vmatpush1.bf16.msra.mxu0 0
        %484 = vmatprep.subr.bf16.mxu0 0
        %485 = vmatpush1.bf16.msra.mxu0 0
        %486 = vmatprep.subr.bf16.mxu0 0
        %487 = vmatpush1.bf16.msra.mxu0 0
        %488 = vmatprep.subr.bf16.mxu0 0
        %489 = vmatpush1.bf16.msra.mxu0 0
        %490 = vmatprep.subr.bf16.mxu0 0
        %491 = vmatpush1.bf16.msra.mxu0 0
        %492 = vmatprep.subr.bf16.mxu0 0
        %493 = vmatpush1.bf16.msra.mxu0 0
        %494 = vmatprep.subr.bf16.mxu0 0
        %495 = vmatpush1.bf16.msra.mxu0 0
        %496 = vmatprep.subr.bf16.mxu0 0
        %497 = vmatpush1.bf16.msra.mxu0 0
        %498 = vmatprep.subr.bf16.mxu0 0
        %499 = vmatpush1.bf16.msra.mxu0 0
        %500 = vmatprep.subr.bf16.mxu0 0
        %501 = vmatpush1.bf16.msra.mxu0 0
        %502 = vmatprep.subr.bf16.mxu0 0
        %503 = vmatpush1.bf16.msra.mxu0 0
        %504 = vmatprep.subr.bf16.mxu0 0
        %505 = vmatpush1.bf16.msra.mxu0 0
        %506 = vmatprep.mubr.bf16.mxu0 0
        %507 = vmatmul.mubr.bf16.gmra.mrb[0].mxu0 %v472
        %v508 = vpop.f32.mrb[0].mxu0
        %v509 = vadd.f32 %v457, %v508
        %v510 = vpop.f32.mrb[0].mxu0
        %v511 = vpop.f32.mrb[0].mxu0
        %v512 = vadd.f32 %v457, %v511
        %v513 = vpop.f32.mrb[0].mxu0
        %514 = vdwg.mxu0
        %515 = vst.msk [vmem:[%s366] sm:$0xff] %vm401, %v509
        %516 = vst.msk [vmem:[%s366 + $0x8] sm:$0xff] %vm401, %v512
        %517 = vst.msk [vmem:[%s373] sm:$0xff] %vm401, %v399
        %518 = vst.msk [vmem:[%s373 + $0x8] sm:$0xff] %vm401, %v400
        %s519 = sand.u32 %s175, 1
        %s520 = scalar_lea.sflag [#allocation4], %s519
        %s521 = sand.u32 %s175, 1
        %s522 = smul.addr %s521, 16
        %s523 = scalar_lea.vmem [#allocation8], %s522
        %s524 = sand.u32 %s201, 1
        %s525 = scalar_lea.sflag [#allocation10], %s524
        %s526 = sand.u32 %s201, 1
        %s527 = smul.addr %s526, 16
        %s528 = scalar_lea.vmem [#allocation9], %s527
        // Predicated region
        $region57: #{tpu_custom_call.1} parent=43 // pred_check
          %p529 = pneg %p185
        $region58: #{tpu_custom_call.1} parent=43 // pred_check_branch
          %531 = sbr.rel (%p529) target = $region60
        $region59: #{tpu_custom_call.1} parent=43 // pred_region
          %s532 = smul.u32 2, %s31
          %s533 = ssub.s32 3, %s532
          %p534 = scmp.lt.s32.totalorder %s533, 2
          %s535 = scalar_select %p534, %s533, 2
          %s536 = smul.u32 128, %s535
          %s538 = ssub.s32 256, %s536
          %539 = vsyncadd %s520, %s538
          %p540 = scmp.ne.s32.totalorder 0, %s536
          %s541 = smul.addr %s532, 128
          %s542 = scalar_lea.hbm %s6, %s541
          %s543 = smul.u32 8, %s535
          %s544 = sshll.u32 %s523, 4
          %s545 = int_to_ptr.vmem [resolvable:$true] %s544
          %s546 = sshll.u32 %s543, 4
          %550 = dma.vmem_to_hbm [thread:$0]  (%p540), %s545, %s546, %s542, %s520, 128, 128, 8
        $region60: #{tpu_custom_call.1} parent=43 // pred_fallthru
          _
        // Predicated region
        $region61: #{tpu_custom_call.1} parent=43 // pred_check
          %p551 = pneg %p211
        $region62: #{tpu_custom_call.1} parent=43 // pred_check_branch
          %553 = sbr.rel (%p551) target = $region64
        $region63: #{tpu_custom_call.1} parent=43 // pred_region
          %s554 = smul.u32 2, %s31
          %s555 = ssub.s32 3, %s554
          %p556 = scmp.lt.s32.totalorder %s555, 2
          %s557 = scalar_select %p556, %s555, 2
          %s558 = smul.u32 128, %s557
          %s560 = ssub.s32 256, %s558
          %561 = vsyncadd %s525, %s560
          %p562 = scmp.ne.s32.totalorder 0, %s558
          %s563 = smul.addr %s554, 128
          %s564 = scalar_lea.hbm %s7, %s563
          %s565 = smul.u32 8, %s557
          %s566 = sshll.u32 %s528, 4
          %s567 = int_to_ptr.vmem [resolvable:$true] %s566
          %s568 = sshll.u32 %s565, 4
          %572 = dma.vmem_to_hbm [thread:$0]  (%p562), %s567, %s568, %s564, %s525, 128, 128, 8
        $region64: #{tpu_custom_call.1} parent=43 // pred_fallthru
          _
      $region44: #{tpu_custom_call.1} parent=5 // pred_fallthru
        _
      %p573 = scmp.le.s32.totalorder 2, %s26
      // Predicated region
      $region65: #{tpu_custom_call.1} parent=5 // pred_check
        %p574 = pneg %p573
      $region66: #{tpu_custom_call.1} parent=5 // pred_check_branch
        %576 = sbr.rel (%p574) target = $region68
      $region67: #{tpu_custom_call.1} parent=5 // pred_region
        %s577 = ssub.s32 %s26, 2
        // Predicated region
        $region69: #{tpu_custom_call.1} parent=67 // pred_check
          %p578 = pneg %p191
        $region70: #{tpu_custom_call.1} parent=67 // pred_check_branch
          %580 = sbr.rel (%p578) target = $region72
        $region71: #{tpu_custom_call.1} parent=67 // pred_region
          %s581 = sand.u32 %s176, 1
          %s582 = scalar_lea.sflag [#allocation4], %s581
          %s583 = sand.u32 %s176, 1
          %s584 = smul.addr %s583, 16
          %s585 = scalar_lea.vmem [#allocation8], %s584
          %586 = dma.done %s582, 256
        $region72: #{tpu_custom_call.1} parent=67 // pred_fallthru
          _
        // Predicated region
        $region73: #{tpu_custom_call.1} parent=67 // pred_check
          %p587 = pneg %p217
        $region74: #{tpu_custom_call.1} parent=67 // pred_check_branch
          %589 = sbr.rel (%p587) target = $region76
        $region75: #{tpu_custom_call.1} parent=67 // pred_region
          %s590 = sand.u32 %s202, 1
          %s591 = scalar_lea.sflag [#allocation10], %s590
          %s592 = sand.u32 %s202, 1
          %s593 = smul.addr %s592, 16
          %s594 = scalar_lea.vmem [#allocation9], %s593
          %595 = dma.done %s591, 256
        $region76: #{tpu_custom_call.1} parent=67 // pred_fallthru
          _
      $region68: #{tpu_custom_call.1} parent=5 // pred_fallthru
        _
    $region6: #{tpu_custom_call.1} parent=1 // loop_footer
      %s30 = sadd.s32 1, %s26
    $region7: #{tpu_custom_call.1} parent=1 // loop_footer_branch
      %25 = sbr.rel target = $region3
    $region8: #{tpu_custom_call.1} parent=1 // loop_exit
      _
    %596 = vsyncpa [#allocation3], 1
    %s597 = scalar_lea.sflag [#allocation3], 1
    %598 = vsyncpa %s597, 1
    %599 = vsyncpa [#allocation6], 1
    %s600 = scalar_lea.sflag [#allocation6], 1
    %601 = vsyncpa %s600, 1
    %602 = vsyncpa [#allocation4], 1
    %s603 = scalar_lea.sflag [#allocation4], 1
    %604 = vsyncpa %s603, 1
    %605 = vsyncpa [#allocation10], 1
    %s606 = scalar_lea.sflag [#allocation10], 1
    %607 = vsyncpa %s606, 1

</llo_original>
